<compile_context>
chip_gen: v7x
topology: tpu7x:2x2x1
jax: 0.10.0
libtpu: 0.0.40
codegen_flags: <defaults>
</compile_context>

<pallas_src>
import jax
import jax.numpy as jnp
from jax.experimental import pallas as pl
from jax.experimental.pallas import tpu as pltpu

IN_FEATURES = 2 * 33          # 66
H1, H2, H3, OUT = 2048, 256, 64, 4
K_PAD = 128                   # padded contraction dim for fc1
N_PAD = 128                   # padded (lane-dense) output dim for fc4


def _round_up(n, m):
    return ((n + m - 1) // m) * m


def mlp_kernel(x_ref, w1_ref, b1_ref, w2_ref, b2_ref, w3_ref, b3_ref,
               w4_ref, b4_ref, o_ref):
    # fc1 (bf16 operands, f32 accumulate) + bias
    h = jnp.dot(x_ref[...], w1_ref[...],
                preferred_element_type=jnp.float32) + b1_ref[...]
    # dropout1 -> identity (eval)
    # fc2
    h = jnp.dot(h.astype(jnp.bfloat16), w2_ref[...],
                preferred_element_type=jnp.float32) + b2_ref[...]
    # dropout2 -> identity (eval)
    # fc3
    h = jnp.dot(h.astype(jnp.bfloat16), w3_ref[...],
                preferred_element_type=jnp.float32) + b3_ref[...]
    # dropout3 -> identity (eval)
    # fc4 (output zero-padded to 128 lanes for unmasked stores)
    h = jnp.dot(h.astype(jnp.bfloat16), w4_ref[...],
                preferred_element_type=jnp.float32) + b4_ref[...]
    o_ref[...] = h.astype(o_ref.dtype)


def mycnn_forward(x, params, *, tm=256):
    """x: (B, 66) float32. params: dict of transposed weights (in, out) + biases (1, out)."""
    B, K = x.shape
    assert K == IN_FEATURES

    # Batch tile: at least 8 rows (sublane alignment), up to `tm` rows per grid step.
    TM = min(tm, _round_up(B, 8))
    B_pad = _round_up(B, TM)

    # Pad + cast at the wrapper boundary (zero rows/cols are numerically inert).
    x_p = jnp.pad(x, ((0, B_pad - B), (0, K_PAD - K))).astype(jnp.bfloat16)
    w1 = jnp.pad(params["w1"], ((0, K_PAD - K), (0, 0))).astype(jnp.bfloat16)
    w2 = params["w2"].astype(jnp.bfloat16)
    w3 = params["w3"].astype(jnp.bfloat16)
    w4 = jnp.pad(params["w4"], ((0, 0), (0, N_PAD - OUT))).astype(jnp.bfloat16)
    b1, b2, b3 = params["b1"], params["b2"], params["b3"]       # f32 bias add
    b4 = jnp.pad(params["b4"], ((0, 0), (0, N_PAD - OUT)))

    grid = (B_pad // TM,)

    # Weights/biases: constant index_map -> stay resident in VMEM across batch tiles.
    const = lambda shape: pl.BlockSpec(shape, lambda i: (0, 0))

    in_specs = [
        pl.BlockSpec((TM, K_PAD), lambda i: (i, 0)),   # x tile (double-buffered)
        const((K_PAD, H1)), const((1, H1)),
        const((H1, H2)),    const((1, H2)),
        const((H2, H3)),    const((1, H3)),
        const((H3, N_PAD)), const((1, N_PAD)),
    ]
    out_spec = pl.BlockSpec((TM, N_PAD), lambda i: (i, 0))

    out = pl.pallas_call(
        mlp_kernel,
        out_shape=jax.ShapeDtypeStruct((B_pad, N_PAD), jnp.float32),
        grid=grid,
        in_specs=in_specs,
        out_specs=out_spec,
        compiler_params=pltpu.CompilerParams(
            dimension_semantics=("parallel",),   # megacore-shard batch tiles on v7x
        ),
    )(x_p, w1, b1, w2, b2, w3, b3, w4, b4)

    return out[:B, :OUT]


def init_params(key):
    """Deterministic init matching nn.Linear shapes (stored transposed: (in, out))."""
    dims = [(IN_FEATURES, H1), (H1, H2), (H2, H3), (H3, OUT)]
    params = {}
    for i, (fan_in, fan_out) in enumerate(dims, start=1):
        key, kw, kb = jax.random.split(key, 3)
        bound = 1.0 / jnp.sqrt(fan_in)
        # PyTorch Linear weight is (out, in); we store its transpose (in, out).
        params[f"w{i}"] = jax.random.uniform(
            kw, (fan_in, fan_out), jnp.float32, -bound, bound)
        params[f"b{i}"] = jax.random.uniform(
            kb, (1, fan_out), jnp.float32, -bound, bound)
    return params


def reference_forward_f32(x, params):
    h = x
    for i in range(1, 5):
        h = h @ params[f"w{i}"] + params[f"b{i}"]
    return h


def reference_forward_bf16(x, params):
    """Same math as the kernel: bf16 operands, f32 accumulation, f32 bias add."""
    h = x.astype(jnp.bfloat16)
    for i in range(1, 5):
        w = params[f"w{i}"].astype(jnp.bfloat16)
        h = jnp.dot(h, w, preferred_element_type=jnp.float32) + params[f"b{i}"]
        if i < 4:
            h = h.astype(jnp.bfloat16)
    return h


if __name__ == "__main__":
    key = jax.random.PRNGKey(0)
    key, kx = jax.random.split(key)

    batch = 8
    x = jax.random.normal(kx, (batch, IN_FEATURES), dtype=jnp.float32)
    params = init_params(key)

    out = mycnn_forward(x, params)
    out = jax.block_until_ready(out)
    assert out.shape == (batch, OUT), out.shape

    # Check against a bf16-matched reference (same precision scheme as the kernel).
    ref_bf16 = reference_forward_bf16(x, params)
    assert jnp.allclose(out, ref_bf16, atol=1e-3, rtol=1e-3), "mismatch vs bf16 reference"

    # Sanity-check against the full-f32 reference with a looser tolerance.
    ref_f32 = reference_forward_f32(x, params)
    assert jnp.allclose(out, ref_f32, atol=5e-2, rtol=5e-2), "mismatch vs f32 reference"

    print("KERNEL_OK")
</pallas_src>

<mosaic_0001>
module attributes {stable_mosaic.version = 11 : i64} {
  func.func @mlp_kernel(%arg0: i32, %arg1: memref<8x128xbf16, #tpu.memory_space<vmem>>, %arg2: memref<128x2048xbf16, #tpu.memory_space<vmem>>, %arg3: memref<1x2048xf32, #tpu.memory_space<vmem>>, %arg4: memref<2048x256xbf16, #tpu.memory_space<vmem>>, %arg5: memref<1x256xf32, #tpu.memory_space<vmem>>, %arg6: memref<256x64xbf16, #tpu.memory_space<vmem>>, %arg7: memref<1x64xf32, #tpu.memory_space<vmem>>, %arg8: memref<64x128xbf16, #tpu.memory_space<vmem>>, %arg9: memref<1x128xf32, #tpu.memory_space<vmem>>, %arg10: memref<8x128xf32, #tpu.memory_space<vmem>>) attributes {dimension_semantics = [#tpu.dimension_semantics<parallel>], iteration_bounds = array<i64: 1>, scalar_prefetch = 0 : i64, scratch_operands = 0 : i64, tpu.core_type = #tpu.core_type<tc>, window_params = [{transform_indices = @transform_0, window_bounds = array<i64: 8, 128>}, {pipeline_mode = #tpu.pipeline_mode<synchronous>, transform_indices = @transform_1, window_bounds = array<i64: 128, 2048>}, {pipeline_mode = #tpu.pipeline_mode<synchronous>, transform_indices = @transform_2, window_bounds = array<i64: 1, 2048>}, {pipeline_mode = #tpu.pipeline_mode<synchronous>, transform_indices = @transform_3, window_bounds = array<i64: 2048, 256>}, {pipeline_mode = #tpu.pipeline_mode<synchronous>, transform_indices = @transform_4, window_bounds = array<i64: 1, 256>}, {pipeline_mode = #tpu.pipeline_mode<synchronous>, transform_indices = @transform_5, window_bounds = array<i64: 256, 64>}, {pipeline_mode = #tpu.pipeline_mode<synchronous>, transform_indices = @transform_6, window_bounds = array<i64: 1, 64>}, {pipeline_mode = #tpu.pipeline_mode<synchronous>, transform_indices = @transform_7, window_bounds = array<i64: 64, 128>}, {pipeline_mode = #tpu.pipeline_mode<synchronous>, transform_indices = @transform_8, window_bounds = array<i64: 1, 128>}, {transform_indices = @transform_9, window_bounds = array<i64: 8, 128>}]} {
    %c0 = arith.constant 0 : index
    %c0_0 = arith.constant 0 : index
    %0 = vector.load %arg1[%c0, %c0_0] : memref<8x128xbf16, #tpu.memory_space<vmem>>, vector<8x128xbf16>
    %c0_1 = arith.constant 0 : index
    %c0_2 = arith.constant 0 : index
    %1 = vector.load %arg2[%c0_1, %c0_2] : memref<128x2048xbf16, #tpu.memory_space<vmem>>, vector<128x2048xbf16>
    %cst = arith.constant dense<0.000000e+00> : vector<8x2048xf32>
    %2 = tpu.matmul %0, %1, %cst {dimension_numbers = #tpu.dot_dimension_numbers<[1], [0], [0], [1], [0, 0, 1, 1], [], []>} : vector<8x128xbf16>, vector<128x2048xbf16>, vector<8x2048xf32> -> vector<8x2048xf32>
    %c0_3 = arith.constant 0 : index
    %c0_4 = arith.constant 0 : index
    %3 = vector.load %arg3[%c0_3, %c0_4] : memref<1x2048xf32, #tpu.memory_space<vmem>>, vector<1x2048xf32>
    %4 = vector.broadcast %3 : vector<1x2048xf32> to vector<8x2048xf32>
    %5 = arith.addf %2, %4 : vector<8x2048xf32>
    %6 = arith.truncf %5 : vector<8x2048xf32> to vector<8x2048xbf16>
    %c0_5 = arith.constant 0 : index
    %c0_6 = arith.constant 0 : index
    %7 = vector.load %arg4[%c0_5, %c0_6] : memref<2048x256xbf16, #tpu.memory_space<vmem>>, vector<2048x256xbf16>
    %cst_7 = arith.constant dense<0.000000e+00> : vector<8x256xf32>
    %8 = tpu.matmul %6, %7, %cst_7 {dimension_numbers = #tpu.dot_dimension_numbers<[1], [0], [0], [1], [0, 0, 1, 1], [], []>} : vector<8x2048xbf16>, vector<2048x256xbf16>, vector<8x256xf32> -> vector<8x256xf32>
    %c0_8 = arith.constant 0 : index
    %c0_9 = arith.constant 0 : index
    %9 = vector.load %arg5[%c0_8, %c0_9] : memref<1x256xf32, #tpu.memory_space<vmem>>, vector<1x256xf32>
    %10 = vector.broadcast %9 : vector<1x256xf32> to vector<8x256xf32>
    %11 = arith.addf %8, %10 : vector<8x256xf32>
    %12 = arith.truncf %11 : vector<8x256xf32> to vector<8x256xbf16>
    %c0_10 = arith.constant 0 : index
    %c0_11 = arith.constant 0 : index
    %13 = vector.load %arg6[%c0_10, %c0_11] : memref<256x64xbf16, #tpu.memory_space<vmem>>, vector<256x64xbf16>
    %cst_12 = arith.constant dense<0.000000e+00> : vector<8x64xf32>
    %14 = tpu.matmul %12, %13, %cst_12 {dimension_numbers = #tpu.dot_dimension_numbers<[1], [0], [0], [1], [0, 0, 1, 1], [], []>} : vector<8x256xbf16>, vector<256x64xbf16>, vector<8x64xf32> -> vector<8x64xf32>
    %c0_13 = arith.constant 0 : index
    %c0_14 = arith.constant 0 : index
    %15 = vector.load %arg7[%c0_13, %c0_14] : memref<1x64xf32, #tpu.memory_space<vmem>>, vector<1x64xf32>
    %16 = vector.broadcast %15 : vector<1x64xf32> to vector<8x64xf32>
    %17 = arith.addf %14, %16 : vector<8x64xf32>
    %18 = arith.truncf %17 : vector<8x64xf32> to vector<8x64xbf16>
    %c0_15 = arith.constant 0 : index
    %c0_16 = arith.constant 0 : index
    %19 = vector.load %arg8[%c0_15, %c0_16] : memref<64x128xbf16, #tpu.memory_space<vmem>>, vector<64x128xbf16>
    %cst_17 = arith.constant dense<0.000000e+00> : vector<8x128xf32>
    %20 = tpu.matmul %18, %19, %cst_17 {dimension_numbers = #tpu.dot_dimension_numbers<[1], [0], [0], [1], [0, 0, 1, 1], [], []>} : vector<8x64xbf16>, vector<64x128xbf16>, vector<8x128xf32> -> vector<8x128xf32>
    %c0_18 = arith.constant 0 : index
    %c0_19 = arith.constant 0 : index
    %21 = vector.load %arg9[%c0_18, %c0_19] : memref<1x128xf32, #tpu.memory_space<vmem>>, vector<1x128xf32>
    %22 = vector.broadcast %21 : vector<1x128xf32> to vector<8x128xf32>
    %23 = arith.addf %20, %22 : vector<8x128xf32>
    %c0_20 = arith.constant 0 : index
    %c0_21 = arith.constant 0 : index
    %24 = vector.load %arg10[%c0_20, %c0_21] : memref<8x128xf32, #tpu.memory_space<vmem>>, vector<8x128xf32>
    tpu.vector_store %arg10[%c0_20, %c0_21], %23 {strides = array<i32>} : memref<8x128xf32, #tpu.memory_space<vmem>>, vector<8x128xf32>,
    return
  }
  func.func @transform_0(%arg0: i32) -> (i32, i32) {
    %c0_i32 = arith.constant 0 : i32
    %c0_i32_0 = arith.constant 0 : i32
    return %arg0, %c0_i32 : i32, i32
  }
  func.func @transform_1(%arg0: i32) -> (i32, i32) {
    %c0_i32 = arith.constant 0 : i32
    %c0_i32_0 = arith.constant 0 : i32
    %c0_i32_1 = arith.constant 0 : i32
    return %c0_i32, %c0_i32_0 : i32, i32
  }
  func.func @transform_2(%arg0: i32) -> (i32, i32) {
    %c0_i32 = arith.constant 0 : i32
    %c0_i32_0 = arith.constant 0 : i32
    %c0_i32_1 = arith.constant 0 : i32
    return %c0_i32, %c0_i32_0 : i32, i32
  }
  func.func @transform_3(%arg0: i32) -> (i32, i32) {
    %c0_i32 = arith.constant 0 : i32
    %c0_i32_0 = arith.constant 0 : i32
    %c0_i32_1 = arith.constant 0 : i32
    return %c0_i32, %c0_i32_0 : i32, i32
  }
  func.func @transform_4(%arg0: i32) -> (i32, i32) {
    %c0_i32 = arith.constant 0 : i32
    %c0_i32_0 = arith.constant 0 : i32
    %c0_i32_1 = arith.constant 0 : i32
    return %c0_i32, %c0_i32_0 : i32, i32
  }
  func.func @transform_5(%arg0: i32) -> (i32, i32) {
    %c0_i32 = arith.constant 0 : i32
    %c0_i32_0 = arith.constant 0 : i32
    %c0_i32_1 = arith.constant 0 : i32
    return %c0_i32, %c0_i32_0 : i32, i32
  }
  func.func @transform_6(%arg0: i32) -> (i32, i32) {
    %c0_i32 = arith.constant 0 : i32
    %c0_i32_0 = arith.constant 0 : i32
    %c0_i32_1 = arith.constant 0 : i32
    return %c0_i32, %c0_i32_0 : i32, i32
  }
  func.func @transform_7(%arg0: i32) -> (i32, i32) {
    %c0_i32 = arith.constant 0 : i32
    %c0_i32_0 = arith.constant 0 : i32
    %c0_i32_1 = arith.constant 0 : i32
    return %c0_i32, %c0_i32_0 : i32, i32
  }
  func.func @transform_8(%arg0: i32) -> (i32, i32) {
    %c0_i32 = arith.constant 0 : i32
    %c0_i32_0 = arith.constant 0 : i32
    %c0_i32_1 = arith.constant 0 : i32
    return %c0_i32, %c0_i32_0 : i32, i32
  }
  func.func @transform_9(%arg0: i32) -> (i32, i32) {
    %c0_i32 = arith.constant 0 : i32
    %c0_i32_0 = arith.constant 0 : i32
    return %arg0, %c0_i32 : i32, i32
  }
}

</mosaic_0001>

<llo_original>
// kernel: tpu_custom_call.1
$region0: #{tpu_custom_call.1}
  #allocation0 [shape = 'u32[]', space=smem, size = 0x4, offset = 0x4, fixed_abs, tag = 'smem constant byte address 0x4 - core index']
  #allocation1 [shape = 'u32[144,128]{1,0:T(1,128)}', space=vmem, size = 0x12000, scoped, tag = 'internal scratch']
  %s0 = inlined_call_operand.vmem [shape: bf16[8,128], index: 0, kind: input, shape index: {}]
  %s1 = inlined_call_operand.hbm [shape: bf16[128,2048], index: 1, kind: input, shape index: {}]
  %s2 = inlined_call_operand.vmem [shape: f32[1,2048], index: 2, kind: input, shape index: {}]
  %s3 = inlined_call_operand.hbm [shape: bf16[2048,256], index: 3, kind: input, shape index: {}]
  %s4 = inlined_call_operand.vmem [shape: f32[1,256], index: 4, kind: input, shape index: {}]
  %s5 = inlined_call_operand.vmem [shape: bf16[256,64], index: 5, kind: input, shape index: {}]
  %s6 = inlined_call_operand.vmem [shape: f32[1,64], index: 6, kind: input, shape index: {}]
  %s7 = inlined_call_operand.vmem [shape: bf16[64,128], index: 7, kind: input, shape index: {}]
  %s8 = inlined_call_operand.vmem [shape: f32[1,128], index: 8, kind: input, shape index: {}]
  %s9 = inlined_call_operand.hbm [shape: f32[8,128], index: 9, kind: output, shape index: {}]
  %s10 = sld [smem:[#allocation0]]
  $region54: #{tpu_custom_call.1} parent=0
    _
  %s12 = ssub.s32 1, %s10
  %s13 = scalar_select 0, %s12, %s10
  $region1: #{tpu_custom_call.1} parent=0
    #allocation2 [shape = 'u8[524288]{0}', space=vmem, size = 0x80000, scoped, tag = 'input window, operand 1, single buffered']
    #allocation3 [shape = 's32[1]{0}', space=sflag, size = 0x4, scoped, tag = 'scoped memory for tpu_custom_call.1']
    #allocation4 [shape = 's32[1]{0}', space=sflag, size = 0x4, scoped, tag = 'scoped memory for tpu_custom_call.1']
    #allocation5 [shape = 'u8[1048576]{0}', space=vmem, size = 0x100000, scoped, tag = 'input window, operand 3, single buffered']
    #allocation6 [shape = 's32[1]{0}', space=sflag, size = 0x4, scoped, tag = 'scoped memory for tpu_custom_call.1']
    #allocation7 [shape = 'u8[4096]{0}', space=vmem, size = 0x1000, scoped, tag = 'output window, operand 0, single buffered']
    %14 = vsyncpa [#allocation3], 0
    %15 = vsyncpa [#allocation6], 0
    %16 = vsyncpa [#allocation4], 0
    // Predicated region
    $region2: #{tpu_custom_call.1} parent=1 // pred_check
      _
    $region3: #{tpu_custom_call.1} parent=1 // pred_check_branch
      %18 = sbr.rel (0) target = $region5
    $region4: #{tpu_custom_call.1} parent=1 // pred_region
      _
    $region5: #{tpu_custom_call.1} parent=1 // pred_fallthru
      _
    // Predicated region
    $region6: #{tpu_custom_call.1} parent=1 // pred_check
      _
    $region7: #{tpu_custom_call.1} parent=1 // pred_check_branch
      %20 = sbr.rel (0) target = $region9
    $region8: #{tpu_custom_call.1} parent=1 // pred_region
      %s22 = ssub.s32 16384, 16384
      %23 = vsyncadd [#allocation3], %s22
      %s24 = sshll.u32 [#allocation2], 4
      %s25 = int_to_ptr.vmem [resolvable:$true] %s24
      %30 = dma.hbm_to_vmem [thread:$0]  %s1, 16384, %s25, [#allocation3], 1024, 1024, 64
    $region9: #{tpu_custom_call.1} parent=1 // pred_fallthru
      _
    // Predicated region
    $region10: #{tpu_custom_call.1} parent=1 // pred_check
      _
    $region11: #{tpu_custom_call.1} parent=1 // pred_check_branch
      %32 = sbr.rel (0) target = $region13
    $region12: #{tpu_custom_call.1} parent=1 // pred_region
      _
    $region13: #{tpu_custom_call.1} parent=1 // pred_fallthru
      _
    // Predicated region
    $region14: #{tpu_custom_call.1} parent=1 // pred_check
      _
    $region15: #{tpu_custom_call.1} parent=1 // pred_check_branch
      %34 = sbr.rel (0) target = $region17
    $region16: #{tpu_custom_call.1} parent=1 // pred_region
      %s36 = ssub.s32 32768, 32768
      %37 = vsyncadd [#allocation6], %s36
      %s38 = sshll.u32 [#allocation5], 4
      %s39 = int_to_ptr.vmem [resolvable:$true] %s38
      %44 = dma.hbm_to_vmem [thread:$0]  %s3, 32768, %s39, [#allocation6], 128, 128, 8
    $region17: #{tpu_custom_call.1} parent=1 // pred_fallthru
      _
    // Predicated region
    $region18: #{tpu_custom_call.1} parent=1 // pred_check
      _
    $region19: #{tpu_custom_call.1} parent=1 // pred_check_branch
      %46 = sbr.rel (0) target = $region21
    $region20: #{tpu_custom_call.1} parent=1 // pred_region
      _
    $region21: #{tpu_custom_call.1} parent=1 // pred_fallthru
      _
    // Predicated region
    $region22: #{tpu_custom_call.1} parent=1 // pred_check
      _
    $region23: #{tpu_custom_call.1} parent=1 // pred_check_branch
      %48 = sbr.rel (0) target = $region25
    $region24: #{tpu_custom_call.1} parent=1 // pred_region
      _
    $region25: #{tpu_custom_call.1} parent=1 // pred_fallthru
      _
    // Predicated region
    $region26: #{tpu_custom_call.1} parent=1 // pred_check
      _
    $region27: #{tpu_custom_call.1} parent=1 // pred_check_branch
      %50 = sbr.rel (0) target = $region29
    $region28: #{tpu_custom_call.1} parent=1 // pred_region
      _
    $region29: #{tpu_custom_call.1} parent=1 // pred_fallthru
      _
    // Predicated region
    $region30: #{tpu_custom_call.1} parent=1 // pred_check
      _
    $region31: #{tpu_custom_call.1} parent=1 // pred_check_branch
      %52 = sbr.rel (0) target = $region33
    $region32: #{tpu_custom_call.1} parent=1 // pred_region
      _
    $region33: #{tpu_custom_call.1} parent=1 // pred_fallthru
      _
    // Predicated region
    $region34: #{tpu_custom_call.1} parent=1 // pred_check
      _
    $region35: #{tpu_custom_call.1} parent=1 // pred_check_branch
      %54 = sbr.rel (0) target = $region37
    $region36: #{tpu_custom_call.1} parent=1 // pred_region
      _
    $region37: #{tpu_custom_call.1} parent=1 // pred_fallthru
      _
    // Predicated region
    $region38: #{tpu_custom_call.1} parent=1 // pred_check
      _
    $region39: #{tpu_custom_call.1} parent=1 // pred_check_branch
      %56 = sbr.rel (0) target = $region41
    $region40: #{tpu_custom_call.1} parent=1 // pred_region
      %57 = dma.done [#allocation3], 16384
    $region41: #{tpu_custom_call.1} parent=1 // pred_fallthru
      _
    // Predicated region
    $region42: #{tpu_custom_call.1} parent=1 // pred_check
      _
    $region43: #{tpu_custom_call.1} parent=1 // pred_check_branch
      %59 = sbr.rel (0) target = $region45
    $region44: #{tpu_custom_call.1} parent=1 // pred_region
      %60 = dma.done [#allocation6], 32768
    $region45: #{tpu_custom_call.1} parent=1 // pred_fallthru
      _
    %v62 = vld [vmem:[%s0] sm:$0xf]
    %v63 = vld [vmem:[#allocation2] sm:$0xff]
    %v64 = vld [vmem:[#allocation2 + $0x8] sm:$0xff]
    %v65 = vld [vmem:[#allocation2 + $0x10] sm:$0xff]
    %v66 = vld [vmem:[#allocation2 + $0x18] sm:$0xff]
    %v67 = vld [vmem:[#allocation2 + $0x20] sm:$0xff]
    %v68 = vld [vmem:[#allocation2 + $0x28] sm:$0xff]
    %v69 = vld [vmem:[#allocation2 + $0x30] sm:$0xff]
    %v70 = vld [vmem:[#allocation2 + $0x38] sm:$0xff]
    %v71 = vld [vmem:[#allocation2 + $0x40] sm:$0xff]
    %v72 = vld [vmem:[#allocation2 + $0x48] sm:$0xff]
    %v73 = vld [vmem:[#allocation2 + $0x50] sm:$0xff]
    %v74 = vld [vmem:[#allocation2 + $0x58] sm:$0xff]
    %v75 = vld [vmem:[#allocation2 + $0x60] sm:$0xff]
    %v76 = vld [vmem:[#allocation2 + $0x68] sm:$0xff]
    %v77 = vld [vmem:[#allocation2 + $0x70] sm:$0xff]
    %v78 = vld [vmem:[#allocation2 + $0x78] sm:$0xff]
    %v79 = vld [vmem:[#allocation2 + $0x80] sm:$0xff]
    %v80 = vld [vmem:[#allocation2 + $0x88] sm:$0xff]
    %v81 = vld [vmem:[#allocation2 + $0x90] sm:$0xff]
    %v82 = vld [vmem:[#allocation2 + $0x98] sm:$0xff]
    %v83 = vld [vmem:[#allocation2 + $0xa0] sm:$0xff]
    %v84 = vld [vmem:[#allocation2 + $0xa8] sm:$0xff]
    %v85 = vld [vmem:[#allocation2 + $0xb0] sm:$0xff]
    %v86 = vld [vmem:[#allocation2 + $0xb8] sm:$0xff]
    %v87 = vld [vmem:[#allocation2 + $0xc0] sm:$0xff]
    %v88 = vld [vmem:[#allocation2 + $0xc8] sm:$0xff]
    %v89 = vld [vmem:[#allocation2 + $0xd0] sm:$0xff]
    %v90 = vld [vmem:[#allocation2 + $0xd8] sm:$0xff]
    %v91 = vld [vmem:[#allocation2 + $0xe0] sm:$0xff]
    %v92 = vld [vmem:[#allocation2 + $0xe8] sm:$0xff]
    %v93 = vld [vmem:[#allocation2 + $0xf0] sm:$0xff]
    %v94 = vld [vmem:[#allocation2 + $0xf8] sm:$0xff]
    %v95 = vld [vmem:[#allocation2 + $0x100] sm:$0xff]
    %v96 = vld [vmem:[#allocation2 + $0x108] sm:$0xff]
    %v97 = vld [vmem:[#allocation2 + $0x110] sm:$0xff]
    %v98 = vld [vmem:[#allocation2 + $0x118] sm:$0xff]
    %v99 = vld [vmem:[#allocation2 + $0x120] sm:$0xff]
    %v100 = vld [vmem:[#allocation2 + $0x128] sm:$0xff]
    %v101 = vld [vmem:[#allocation2 + $0x130] sm:$0xff]
    %v102 = vld [vmem:[#allocation2 + $0x138] sm:$0xff]
    %v103 = vld [vmem:[#allocation2 + $0x140] sm:$0xff]
    %v104 = vld [vmem:[#allocation2 + $0x148] sm:$0xff]
    %v105 = vld [vmem:[#allocation2 + $0x150] sm:$0xff]
    %v106 = vld [vmem:[#allocation2 + $0x158] sm:$0xff]
    %v107 = vld [vmem:[#allocation2 + $0x160] sm:$0xff]
    %v108 = vld [vmem:[#allocation2 + $0x168] sm:$0xff]
    %v109 = vld [vmem:[#allocation2 + $0x170] sm:$0xff]
    %v110 = vld [vmem:[#allocation2 + $0x178] sm:$0xff]
    %v111 = vld [vmem:[#allocation2 + $0x180] sm:$0xff]
    %v112 = vld [vmem:[#allocation2 + $0x188] sm:$0xff]
    %v113 = vld [vmem:[#allocation2 + $0x190] sm:$0xff]
    %v114 = vld [vmem:[#allocation2 + $0x198] sm:$0xff]
    %v115 = vld [vmem:[#allocation2 + $0x1a0] sm:$0xff]
    %v116 = vld [vmem:[#allocation2 + $0x1a8] sm:$0xff]
    %v117 = vld [vmem:[#allocation2 + $0x1b0] sm:$0xff]
    %v118 = vld [vmem:[#allocation2 + $0x1b8] sm:$0xff]
    %v119 = vld [vmem:[#allocation2 + $0x1c0] sm:$0xff]
    %v120 = vld [vmem:[#allocation2 + $0x1c8] sm:$0xff]
    %v121 = vld [vmem:[#allocation2 + $0x1d0] sm:$0xff]
    %v122 = vld [vmem:[#allocation2 + $0x1d8] sm:$0xff]
    %v123 = vld [vmem:[#allocation2 + $0x1e0] sm:$0xff]
    %v124 = vld [vmem:[#allocation2 + $0x1e8] sm:$0xff]
    %v125 = vld [vmem:[#allocation2 + $0x1f0] sm:$0xff]
    %v126 = vld [vmem:[#allocation2 + $0x1f8] sm:$0xff]
    %v127 = vld [vmem:[#allocation2 + $0x200] sm:$0xff]
    %v128 = vld [vmem:[#allocation2 + $0x208] sm:$0xff]
    %v129 = vld [vmem:[#allocation2 + $0x210] sm:$0xff]
    %v130 = vld [vmem:[#allocation2 + $0x218] sm:$0xff]
    %v131 = vld [vmem:[#allocation2 + $0x220] sm:$0xff]
    %v132 = vld [vmem:[#allocation2 + $0x228] sm:$0xff]
    %v133 = vld [vmem:[#allocation2 + $0x230] sm:$0xff]
    %v134 = vld [vmem:[#allocation2 + $0x238] sm:$0xff]
    %v135 = vld [vmem:[#allocation2 + $0x240] sm:$0xff]
    %v136 = vld [vmem:[#allocation2 + $0x248] sm:$0xff]
    %v137 = vld [vmem:[#allocation2 + $0x250] sm:$0xff]
    %v138 = vld [vmem:[#allocation2 + $0x258] sm:$0xff]
    %v139 = vld [vmem:[#allocation2 + $0x260] sm:$0xff]
    %v140 = vld [vmem:[#allocation2 + $0x268] sm:$0xff]
    %v141 = vld [vmem:[#allocation2 + $0x270] sm:$0xff]
    %v142 = vld [vmem:[#allocation2 + $0x278] sm:$0xff]
    %v143 = vld [vmem:[#allocation2 + $0x280] sm:$0xff]
    %v144 = vld [vmem:[#allocation2 + $0x288] sm:$0xff]
    %v145 = vld [vmem:[#allocation2 + $0x290] sm:$0xff]
    %v146 = vld [vmem:[#allocation2 + $0x298] sm:$0xff]
    %v147 = vld [vmem:[#allocation2 + $0x2a0] sm:$0xff]
    %v148 = vld [vmem:[#allocation2 + $0x2a8] sm:$0xff]
    %v149 = vld [vmem:[#allocation2 + $0x2b0] sm:$0xff]
    %v150 = vld [vmem:[#allocation2 + $0x2b8] sm:$0xff]
    %v151 = vld [vmem:[#allocation2 + $0x2c0] sm:$0xff]
    %v152 = vld [vmem:[#allocation2 + $0x2c8] sm:$0xff]
    %v153 = vld [vmem:[#allocation2 + $0x2d0] sm:$0xff]
    %v154 = vld [vmem:[#allocation2 + $0x2d8] sm:$0xff]
    %v155 = vld [vmem:[#allocation2 + $0x2e0] sm:$0xff]
    %v156 = vld [vmem:[#allocation2 + $0x2e8] sm:$0xff]
    %v157 = vld [vmem:[#allocation2 + $0x2f0] sm:$0xff]
    %v158 = vld [vmem:[#allocation2 + $0x2f8] sm:$0xff]
    %v159 = vld [vmem:[#allocation2 + $0x300] sm:$0xff]
    %v160 = vld [vmem:[#allocation2 + $0x308] sm:$0xff]
    %v161 = vld [vmem:[#allocation2 + $0x310] sm:$0xff]
    %v162 = vld [vmem:[#allocation2 + $0x318] sm:$0xff]
    %v163 = vld [vmem:[#allocation2 + $0x320] sm:$0xff]
    %v164 = vld [vmem:[#allocation2 + $0x328] sm:$0xff]
    %v165 = vld [vmem:[#allocation2 + $0x330] sm:$0xff]
    %v166 = vld [vmem:[#allocation2 + $0x338] sm:$0xff]
    %v167 = vld [vmem:[#allocation2 + $0x340] sm:$0xff]
    %v168 = vld [vmem:[#allocation2 + $0x348] sm:$0xff]
    %v169 = vld [vmem:[#allocation2 + $0x350] sm:$0xff]
    %v170 = vld [vmem:[#allocation2 + $0x358] sm:$0xff]
    %v171 = vld [vmem:[#allocation2 + $0x360] sm:$0xff]
    %v172 = vld [vmem:[#allocation2 + $0x368] sm:$0xff]
    %v173 = vld [vmem:[#allocation2 + $0x370] sm:$0xff]
    %v174 = vld [vmem:[#allocation2 + $0x378] sm:$0xff]
    %v175 = vld [vmem:[#allocation2 + $0x380] sm:$0xff]
    %v176 = vld [vmem:[#allocation2 + $0x388] sm:$0xff]
    %v177 = vld [vmem:[#allocation2 + $0x390] sm:$0xff]
    %v178 = vld [vmem:[#allocation2 + $0x398] sm:$0xff]
    %v179 = vld [vmem:[#allocation2 + $0x3a0] sm:$0xff]
    %v180 = vld [vmem:[#allocation2 + $0x3a8] sm:$0xff]
    %v181 = vld [vmem:[#allocation2 + $0x3b0] sm:$0xff]
    %v182 = vld [vmem:[#allocation2 + $0x3b8] sm:$0xff]
    %v183 = vld [vmem:[#allocation2 + $0x3c0] sm:$0xff]
    %v184 = vld [vmem:[#allocation2 + $0x3c8] sm:$0xff]
    %v185 = vld [vmem:[#allocation2 + $0x3d0] sm:$0xff]
    %v186 = vld [vmem:[#allocation2 + $0x3d8] sm:$0xff]
    %v187 = vld [vmem:[#allocation2 + $0x3e0] sm:$0xff]
    %v188 = vld [vmem:[#allocation2 + $0x3e8] sm:$0xff]
    %v189 = vld [vmem:[#allocation2 + $0x3f0] sm:$0xff]
    %v190 = vld [vmem:[#allocation2 + $0x3f8] sm:$0xff]
    %v191 = vld [vmem:[%s2] sm:$0xff]
    %v192 = vld [vmem:[%s2 + $0x8] sm:$0xff]
    %v195 = vlaneseq
    %v196 = vshrl.u32 %v195, 7
    %v197 = vsub.s32 0, %v196
    %v198 = vrot.slane %v191, %v197
    %v199 = vlaneseq
    %v200 = vshrl.u32 %v199, 7
    %v201 = vsub.s32 1, %v200
    %v202 = vrot.slane %v191, %v201
    %v203 = vlaneseq
    %v204 = vshrl.u32 %v203, 7
    %v205 = vsub.s32 2, %v204
    %v206 = vrot.slane %v191, %v205
    %v207 = vlaneseq
    %v208 = vshrl.u32 %v207, 7
    %v209 = vsub.s32 3, %v208
    %v210 = vrot.slane %v191, %v209
    %v211 = vlaneseq
    %v212 = vshrl.u32 %v211, 7
    %v213 = vsub.s32 4, %v212
    %v214 = vrot.slane %v191, %v213
    %v215 = vlaneseq
    %v216 = vshrl.u32 %v215, 7
    %v217 = vsub.s32 5, %v216
    %v218 = vrot.slane %v191, %v217
    %v219 = vlaneseq
    %v220 = vshrl.u32 %v219, 7
    %v221 = vsub.s32 6, %v220
    %v222 = vrot.slane %v191, %v221
    %v223 = vlaneseq
    %v224 = vshrl.u32 %v223, 7
    %v225 = vsub.s32 7, %v224
    %v226 = vrot.slane %v191, %v225
    %v227 = vlaneseq
    %v228 = vshrl.u32 %v227, 7
    %v229 = vsub.s32 0, %v228
    %v230 = vrot.slane %v192, %v229
    %v231 = vlaneseq
    %v232 = vshrl.u32 %v231, 7
    %v233 = vsub.s32 1, %v232
    %v234 = vrot.slane %v192, %v233
    %v235 = vlaneseq
    %v236 = vshrl.u32 %v235, 7
    %v237 = vsub.s32 2, %v236
    %v238 = vrot.slane %v192, %v237
    %v239 = vlaneseq
    %v240 = vshrl.u32 %v239, 7
    %v241 = vsub.s32 3, %v240
    %v242 = vrot.slane %v192, %v241
    %v243 = vlaneseq
    %v244 = vshrl.u32 %v243, 7
    %v245 = vsub.s32 4, %v244
    %v246 = vrot.slane %v192, %v245
    %v247 = vlaneseq
    %v248 = vshrl.u32 %v247, 7
    %v249 = vsub.s32 5, %v248
    %v250 = vrot.slane %v192, %v249
    %v251 = vlaneseq
    %v252 = vshrl.u32 %v251, 7
    %v253 = vsub.s32 6, %v252
    %v254 = vrot.slane %v192, %v253
    %v255 = vlaneseq
    %v256 = vshrl.u32 %v255, 7
    %v257 = vsub.s32 7, %v256
    %v258 = vrot.slane %v192, %v257
    %v403 = vunpack.c.l.b16 %v63
    %v404 = vunpack.c.h.b16 %v63
    %v405 = vunpack.c.l.b16 %v64
    %v406 = vunpack.c.h.b16 %v64
    %v407 = vunpack.c.l.b16 %v65
    %v408 = vunpack.c.h.b16 %v65
    %v409 = vunpack.c.l.b16 %v66
    %v410 = vunpack.c.h.b16 %v66
    %v411 = vunpack.c.l.b16 %v67
    %v412 = vunpack.c.h.b16 %v67
    %v413 = vunpack.c.l.b16 %v68
    %v414 = vunpack.c.h.b16 %v68
    %v415 = vunpack.c.l.b16 %v69
    %v416 = vunpack.c.h.b16 %v69
    %v417 = vunpack.c.l.b16 %v70
    %v418 = vunpack.c.h.b16 %v70
    %v419 = vunpack.c.l.b16 %v71
    %v420 = vunpack.c.h.b16 %v71
    %v421 = vunpack.c.l.b16 %v72
    %v422 = vunpack.c.h.b16 %v72
    %v423 = vunpack.c.l.b16 %v73
    %v424 = vunpack.c.h.b16 %v73
    %v425 = vunpack.c.l.b16 %v74
    %v426 = vunpack.c.h.b16 %v74
    %v427 = vunpack.c.l.b16 %v75
    %v428 = vunpack.c.h.b16 %v75
    %v429 = vunpack.c.l.b16 %v76
    %v430 = vunpack.c.h.b16 %v76
    %v431 = vunpack.c.l.b16 %v77
    %v432 = vunpack.c.h.b16 %v77
    %v433 = vunpack.c.l.b16 %v78
    %v434 = vunpack.c.h.b16 %v78
    %v435 = vunpack.c.l.b16 %v79
    %v436 = vunpack.c.h.b16 %v79
    %v437 = vunpack.c.l.b16 %v80
    %v438 = vunpack.c.h.b16 %v80
    %v439 = vunpack.c.l.b16 %v81
    %v440 = vunpack.c.h.b16 %v81
    %v441 = vunpack.c.l.b16 %v82
    %v442 = vunpack.c.h.b16 %v82
    %v443 = vunpack.c.l.b16 %v83
    %v444 = vunpack.c.h.b16 %v83
    %v445 = vunpack.c.l.b16 %v84
    %v446 = vunpack.c.h.b16 %v84
    %v447 = vunpack.c.l.b16 %v85
    %v448 = vunpack.c.h.b16 %v85
    %v449 = vunpack.c.l.b16 %v86
    %v450 = vunpack.c.h.b16 %v86
    %v451 = vunpack.c.l.b16 %v87
    %v452 = vunpack.c.h.b16 %v87
    %v453 = vunpack.c.l.b16 %v88
    %v454 = vunpack.c.h.b16 %v88
    %v455 = vunpack.c.l.b16 %v89
    %v456 = vunpack.c.h.b16 %v89
    %v457 = vunpack.c.l.b16 %v90
    %v458 = vunpack.c.h.b16 %v90
    %v459 = vunpack.c.l.b16 %v91
    %v460 = vunpack.c.h.b16 %v91
    %v461 = vunpack.c.l.b16 %v92
    %v462 = vunpack.c.h.b16 %v92
    %v463 = vunpack.c.l.b16 %v93
    %v464 = vunpack.c.h.b16 %v93
    %v465 = vunpack.c.l.b16 %v94
    %v466 = vunpack.c.h.b16 %v94
    %v467 = vunpack.c.l.b16 %v95
    %v468 = vunpack.c.h.b16 %v95
    %v469 = vunpack.c.l.b16 %v96
    %v470 = vunpack.c.h.b16 %v96
    %v471 = vunpack.c.l.b16 %v97
    %v472 = vunpack.c.h.b16 %v97
    %v473 = vunpack.c.l.b16 %v98
    %v474 = vunpack.c.h.b16 %v98
    %v475 = vunpack.c.l.b16 %v99
    %v476 = vunpack.c.h.b16 %v99
    %v477 = vunpack.c.l.b16 %v100
    %v478 = vunpack.c.h.b16 %v100
    %v479 = vunpack.c.l.b16 %v101
    %v480 = vunpack.c.h.b16 %v101
    %v481 = vunpack.c.l.b16 %v102
    %v482 = vunpack.c.h.b16 %v102
    %v483 = vunpack.c.l.b16 %v103
    %v484 = vunpack.c.h.b16 %v103
    %v485 = vunpack.c.l.b16 %v104
    %v486 = vunpack.c.h.b16 %v104
    %v487 = vunpack.c.l.b16 %v105
    %v488 = vunpack.c.h.b16 %v105
    %v489 = vunpack.c.l.b16 %v106
    %v490 = vunpack.c.h.b16 %v106
    %v491 = vunpack.c.l.b16 %v107
    %v492 = vunpack.c.h.b16 %v107
    %v493 = vunpack.c.l.b16 %v108
    %v494 = vunpack.c.h.b16 %v108
    %v495 = vunpack.c.l.b16 %v109
    %v496 = vunpack.c.h.b16 %v109
    %v497 = vunpack.c.l.b16 %v110
    %v498 = vunpack.c.h.b16 %v110
    %v499 = vunpack.c.l.b16 %v111
    %v500 = vunpack.c.h.b16 %v111
    %v501 = vunpack.c.l.b16 %v112
    %v502 = vunpack.c.h.b16 %v112
    %v503 = vunpack.c.l.b16 %v113
    %v504 = vunpack.c.h.b16 %v113
    %v505 = vunpack.c.l.b16 %v114
    %v506 = vunpack.c.h.b16 %v114
    %v507 = vunpack.c.l.b16 %v115
    %v508 = vunpack.c.h.b16 %v115
    %v509 = vunpack.c.l.b16 %v116
    %v510 = vunpack.c.h.b16 %v116
    %v511 = vunpack.c.l.b16 %v117
    %v512 = vunpack.c.h.b16 %v117
    %v513 = vunpack.c.l.b16 %v118
    %v514 = vunpack.c.h.b16 %v118
    %v515 = vunpack.c.l.b16 %v119
    %v516 = vunpack.c.h.b16 %v119
    %v517 = vunpack.c.l.b16 %v120
    %v518 = vunpack.c.h.b16 %v120
    %v519 = vunpack.c.l.b16 %v121
    %v520 = vunpack.c.h.b16 %v121
    %v521 = vunpack.c.l.b16 %v122
    %v522 = vunpack.c.h.b16 %v122
    %v523 = vunpack.c.l.b16 %v123
    %v524 = vunpack.c.h.b16 %v123
    %v525 = vunpack.c.l.b16 %v124
    %v526 = vunpack.c.h.b16 %v124
    %v527 = vunpack.c.l.b16 %v125
    %v528 = vunpack.c.h.b16 %v125
    %v529 = vunpack.c.l.b16 %v126
    %v530 = vunpack.c.h.b16 %v126
    %v531 = vunpack.c.l.b16 %v127
    %v532 = vunpack.c.h.b16 %v127
    %v533 = vunpack.c.l.b16 %v128
    %v534 = vunpack.c.h.b16 %v128
    %v535 = vunpack.c.l.b16 %v129
    %v536 = vunpack.c.h.b16 %v129
    %v537 = vunpack.c.l.b16 %v130
    %v538 = vunpack.c.h.b16 %v130
    %v539 = vunpack.c.l.b16 %v131
    %v540 = vunpack.c.h.b16 %v131
    %v541 = vunpack.c.l.b16 %v132
    %v542 = vunpack.c.h.b16 %v132
    %v543 = vunpack.c.l.b16 %v133
    %v544 = vunpack.c.h.b16 %v133
    %v545 = vunpack.c.l.b16 %v134
    %v546 = vunpack.c.h.b16 %v134
    %v547 = vunpack.c.l.b16 %v135
    %v548 = vunpack.c.h.b16 %v135
    %v549 = vunpack.c.l.b16 %v136
    %v550 = vunpack.c.h.b16 %v136
    %v551 = vunpack.c.l.b16 %v137
    %v552 = vunpack.c.h.b16 %v137
    %v553 = vunpack.c.l.b16 %v138
    %v554 = vunpack.c.h.b16 %v138
    %v555 = vunpack.c.l.b16 %v139
    %v556 = vunpack.c.h.b16 %v139
    %v557 = vunpack.c.l.b16 %v140
    %v558 = vunpack.c.h.b16 %v140
    %v559 = vunpack.c.l.b16 %v141
    %v560 = vunpack.c.h.b16 %v141
    %v561 = vunpack.c.l.b16 %v142
    %v562 = vunpack.c.h.b16 %v142
    %v563 = vunpack.c.l.b16 %v143
    %v564 = vunpack.c.h.b16 %v143
    %v565 = vunpack.c.l.b16 %v144
    %v566 = vunpack.c.h.b16 %v144
    %v567 = vunpack.c.l.b16 %v145
    %v568 = vunpack.c.h.b16 %v145
    %v569 = vunpack.c.l.b16 %v146
    %v570 = vunpack.c.h.b16 %v146
    %v571 = vunpack.c.l.b16 %v147
    %v572 = vunpack.c.h.b16 %v147
    %v573 = vunpack.c.l.b16 %v148
    %v574 = vunpack.c.h.b16 %v148
    %v575 = vunpack.c.l.b16 %v149
    %v576 = vunpack.c.h.b16 %v149
    %v577 = vunpack.c.l.b16 %v150
    %v578 = vunpack.c.h.b16 %v150
    %v579 = vunpack.c.l.b16 %v151
    %v580 = vunpack.c.h.b16 %v151
    %v581 = vunpack.c.l.b16 %v152
    %v582 = vunpack.c.h.b16 %v152
    %v583 = vunpack.c.l.b16 %v153
    %v584 = vunpack.c.h.b16 %v153
    %v585 = vunpack.c.l.b16 %v154
    %v586 = vunpack.c.h.b16 %v154
    %v587 = vunpack.c.l.b16 %v155
    %v588 = vunpack.c.h.b16 %v155
    %v589 = vunpack.c.l.b16 %v156
    %v590 = vunpack.c.h.b16 %v156
    %v591 = vunpack.c.l.b16 %v157
    %v592 = vunpack.c.h.b16 %v157
    %v593 = vunpack.c.l.b16 %v158
    %v594 = vunpack.c.h.b16 %v158
    %v595 = vunpack.c.l.b16 %v159
    %v596 = vunpack.c.h.b16 %v159
    %v597 = vunpack.c.l.b16 %v160
    %v598 = vunpack.c.h.b16 %v160
    %v599 = vunpack.c.l.b16 %v161
    %v600 = vunpack.c.h.b16 %v161
    %v601 = vunpack.c.l.b16 %v162
    %v602 = vunpack.c.h.b16 %v162
    %v603 = vunpack.c.l.b16 %v163
    %v604 = vunpack.c.h.b16 %v163
    %v605 = vunpack.c.l.b16 %v164
    %v606 = vunpack.c.h.b16 %v164
    %v607 = vunpack.c.l.b16 %v165
    %v608 = vunpack.c.h.b16 %v165
    %v609 = vunpack.c.l.b16 %v166
    %v610 = vunpack.c.h.b16 %v166
    %v611 = vunpack.c.l.b16 %v167
    %v612 = vunpack.c.h.b16 %v167
    %v613 = vunpack.c.l.b16 %v168
    %v614 = vunpack.c.h.b16 %v168
    %v615 = vunpack.c.l.b16 %v169
    %v616 = vunpack.c.h.b16 %v169
    %v617 = vunpack.c.l.b16 %v170
    %v618 = vunpack.c.h.b16 %v170
    %v619 = vunpack.c.l.b16 %v171
    %v620 = vunpack.c.h.b16 %v171
    %v621 = vunpack.c.l.b16 %v172
    %v622 = vunpack.c.h.b16 %v172
    %v623 = vunpack.c.l.b16 %v173
    %v624 = vunpack.c.h.b16 %v173
    %v625 = vunpack.c.l.b16 %v174
    %v626 = vunpack.c.h.b16 %v174
    %v627 = vunpack.c.l.b16 %v175
    %v628 = vunpack.c.h.b16 %v175
    %v629 = vunpack.c.l.b16 %v176
    %v630 = vunpack.c.h.b16 %v176
    %v631 = vunpack.c.l.b16 %v177
    %v632 = vunpack.c.h.b16 %v177
    %v633 = vunpack.c.l.b16 %v178
    %v634 = vunpack.c.h.b16 %v178
    %v635 = vunpack.c.l.b16 %v179
    %v636 = vunpack.c.h.b16 %v179
    %v637 = vunpack.c.l.b16 %v180
    %v638 = vunpack.c.h.b16 %v180
    %v639 = vunpack.c.l.b16 %v181
    %v640 = vunpack.c.h.b16 %v181
    %v641 = vunpack.c.l.b16 %v182
    %v642 = vunpack.c.h.b16 %v182
    %v643 = vunpack.c.l.b16 %v183
    %v644 = vunpack.c.h.b16 %v183
    %v645 = vunpack.c.l.b16 %v184
    %v646 = vunpack.c.h.b16 %v184
    %v647 = vunpack.c.l.b16 %v185
    %v648 = vunpack.c.h.b16 %v185
    %v649 = vunpack.c.l.b16 %v186
    %v650 = vunpack.c.h.b16 %v186
    %v651 = vunpack.c.l.b16 %v187
    %v652 = vunpack.c.h.b16 %v187
    %v653 = vunpack.c.l.b16 %v188
    %v654 = vunpack.c.h.b16 %v188
    %v655 = vunpack.c.l.b16 %v189
    %v656 = vunpack.c.h.b16 %v189
    %v657 = vunpack.c.l.b16 %v190
    %v658 = vunpack.c.h.b16 %v190
    %v659 = vpack.c.b16 %v419, %v403
    %v660 = vpack.c.b16 %v420, %v404
    %v661 = vpack.c.b16 %v421, %v405
    %v662 = vpack.c.b16 %v422, %v406
    %v663 = vpack.c.b16 %v423, %v407
    %v664 = vpack.c.b16 %v424, %v408
    %v665 = vpack.c.b16 %v425, %v409
    %v666 = vpack.c.b16 %v426, %v410
    %v667 = vpack.c.b16 %v427, %v411
    %v668 = vpack.c.b16 %v428, %v412
    %v669 = vpack.c.b16 %v429, %v413
    %v670 = vpack.c.b16 %v430, %v414
    %v671 = vpack.c.b16 %v431, %v415
    %v672 = vpack.c.b16 %v432, %v416
    %v673 = vpack.c.b16 %v433, %v417
    %v674 = vpack.c.b16 %v434, %v418
    %v675 = vpack.c.b16 %v451, %v435
    %v676 = vpack.c.b16 %v452, %v436
    %v677 = vpack.c.b16 %v453, %v437
    %v678 = vpack.c.b16 %v454, %v438
    %v679 = vpack.c.b16 %v455, %v439
    %v680 = vpack.c.b16 %v456, %v440
    %v681 = vpack.c.b16 %v457, %v441
    %v682 = vpack.c.b16 %v458, %v442
    %v683 = vpack.c.b16 %v459, %v443
    %v684 = vpack.c.b16 %v460, %v444
    %v685 = vpack.c.b16 %v461, %v445
    %v686 = vpack.c.b16 %v462, %v446
    %v687 = vpack.c.b16 %v463, %v447
    %v688 = vpack.c.b16 %v464, %v448
    %v689 = vpack.c.b16 %v465, %v449
    %v690 = vpack.c.b16 %v466, %v450
    %v691 = vpack.c.b16 %v483, %v467
    %v692 = vpack.c.b16 %v484, %v468
    %v693 = vpack.c.b16 %v485, %v469
    %v694 = vpack.c.b16 %v486, %v470
    %v695 = vpack.c.b16 %v487, %v471
    %v696 = vpack.c.b16 %v488, %v472
    %v697 = vpack.c.b16 %v489, %v473
    %v698 = vpack.c.b16 %v490, %v474
    %v699 = vpack.c.b16 %v491, %v475
    %v700 = vpack.c.b16 %v492, %v476
    %v701 = vpack.c.b16 %v493, %v477
    %v702 = vpack.c.b16 %v494, %v478
    %v703 = vpack.c.b16 %v495, %v479
    %v704 = vpack.c.b16 %v496, %v480
    %v705 = vpack.c.b16 %v497, %v481
    %v706 = vpack.c.b16 %v498, %v482
    %v707 = vpack.c.b16 %v515, %v499
    %v708 = vpack.c.b16 %v516, %v500
    %v709 = vpack.c.b16 %v517, %v501
    %v710 = vpack.c.b16 %v518, %v502
    %v711 = vpack.c.b16 %v519, %v503
    %v712 = vpack.c.b16 %v520, %v504
    %v713 = vpack.c.b16 %v521, %v505
    %v714 = vpack.c.b16 %v522, %v506
    %v715 = vpack.c.b16 %v523, %v507
    %v716 = vpack.c.b16 %v524, %v508
    %v717 = vpack.c.b16 %v525, %v509
    %v718 = vpack.c.b16 %v526, %v510
    %v719 = vpack.c.b16 %v527, %v511
    %v720 = vpack.c.b16 %v528, %v512
    %v721 = vpack.c.b16 %v529, %v513
    %v722 = vpack.c.b16 %v530, %v514
    %v723 = vpack.c.b16 %v547, %v531
    %v724 = vpack.c.b16 %v548, %v532
    %v725 = vpack.c.b16 %v549, %v533
    %v726 = vpack.c.b16 %v550, %v534
    %v727 = vpack.c.b16 %v551, %v535
    %v728 = vpack.c.b16 %v552, %v536
    %v729 = vpack.c.b16 %v553, %v537
    %v730 = vpack.c.b16 %v554, %v538
    %v731 = vpack.c.b16 %v555, %v539
    %v732 = vpack.c.b16 %v556, %v540
    %v733 = vpack.c.b16 %v557, %v541
    %v734 = vpack.c.b16 %v558, %v542
    %v735 = vpack.c.b16 %v559, %v543
    %v736 = vpack.c.b16 %v560, %v544
    %v737 = vpack.c.b16 %v561, %v545
    %v738 = vpack.c.b16 %v562, %v546
    %v739 = vpack.c.b16 %v579, %v563
    %v740 = vpack.c.b16 %v580, %v564
    %v741 = vpack.c.b16 %v581, %v565
    %v742 = vpack.c.b16 %v582, %v566
    %v743 = vpack.c.b16 %v583, %v567
    %v744 = vpack.c.b16 %v584, %v568
    %v745 = vpack.c.b16 %v585, %v569
    %v746 = vpack.c.b16 %v586, %v570
    %v747 = vpack.c.b16 %v587, %v571
    %v748 = vpack.c.b16 %v588, %v572
    %v749 = vpack.c.b16 %v589, %v573
    %v750 = vpack.c.b16 %v590, %v574
    %v751 = vpack.c.b16 %v591, %v575
    %v752 = vpack.c.b16 %v592, %v576
    %v753 = vpack.c.b16 %v593, %v577
    %v754 = vpack.c.b16 %v594, %v578
    %v755 = vpack.c.b16 %v611, %v595
    %v756 = vpack.c.b16 %v612, %v596
    %v757 = vpack.c.b16 %v613, %v597
    %v758 = vpack.c.b16 %v614, %v598
    %v759 = vpack.c.b16 %v615, %v599
    %v760 = vpack.c.b16 %v616, %v600
    %v761 = vpack.c.b16 %v617, %v601
    %v762 = vpack.c.b16 %v618, %v602
    %v763 = vpack.c.b16 %v619, %v603
    %v764 = vpack.c.b16 %v620, %v604
    %v765 = vpack.c.b16 %v621, %v605
    %v766 = vpack.c.b16 %v622, %v606
    %v767 = vpack.c.b16 %v623, %v607
    %v768 = vpack.c.b16 %v624, %v608
    %v769 = vpack.c.b16 %v625, %v609
    %v770 = vpack.c.b16 %v626, %v610
    %v771 = vpack.c.b16 %v643, %v627
    %v772 = vpack.c.b16 %v644, %v628
    %v773 = vpack.c.b16 %v645, %v629
    %v774 = vpack.c.b16 %v646, %v630
    %v775 = vpack.c.b16 %v647, %v631
    %v776 = vpack.c.b16 %v648, %v632
    %v777 = vpack.c.b16 %v649, %v633
    %v778 = vpack.c.b16 %v650, %v634
    %v779 = vpack.c.b16 %v651, %v635
    %v780 = vpack.c.b16 %v652, %v636
    %v781 = vpack.c.b16 %v653, %v637
    %v782 = vpack.c.b16 %v654, %v638
    %v783 = vpack.c.b16 %v655, %v639
    %v784 = vpack.c.b16 %v656, %v640
    %v785 = vpack.c.b16 %v657, %v641
    %v786 = vpack.c.b16 %v658, %v642
    %915 = vmatprep.subr.bf16.mxu0 %v660
    %916 = vmatpush1.bf16.msra.mxu0 %v659
    %917 = vmatprep.subr.bf16.mxu0 %v676
    %918 = vmatpush1.bf16.msra.mxu0 %v675
    %919 = vmatprep.subr.bf16.mxu0 %v692
    %920 = vmatpush1.bf16.msra.mxu0 %v691
    %921 = vmatprep.subr.bf16.mxu0 %v708
    %922 = vmatpush1.bf16.msra.mxu0 %v707
    %923 = vmatprep.subr.bf16.mxu0 %v724
    %924 = vmatpush1.bf16.msra.mxu0 %v723
    %925 = vmatprep.subr.bf16.mxu0 %v740
    %926 = vmatpush1.bf16.msra.mxu0 %v739
    %927 = vmatprep.subr.bf16.mxu0 %v756
    %928 = vmatpush1.bf16.msra.mxu0 %v755
    %929 = vmatprep.subr.bf16.mxu0 %v772
    %930 = vmatpush1.bf16.msra.mxu0 %v771
    %931 = vmatprep.subr.bf16.mxu0 0
    %932 = vmatpush1.bf16.msra.mxu0 0
    %933 = vmatprep.subr.bf16.mxu0 0
    %934 = vmatpush1.bf16.msra.mxu0 0
    %935 = vmatprep.subr.bf16.mxu0 0
    %936 = vmatpush1.bf16.msra.mxu0 0
    %937 = vmatprep.subr.bf16.mxu0 0
    %938 = vmatpush1.bf16.msra.mxu0 0
    %939 = vmatprep.subr.bf16.mxu0 0
    %940 = vmatpush1.bf16.msra.mxu0 0
    %941 = vmatprep.subr.bf16.mxu0 0
    %942 = vmatpush1.bf16.msra.mxu0 0
    %943 = vmatprep.subr.bf16.mxu0 0
    %944 = vmatpush1.bf16.msra.mxu0 0
    %945 = vmatprep.subr.bf16.mxu0 0
    %946 = vmatpush1.bf16.msra.mxu0 0
    %947 = vmatprep.mubr.bf16.mxu0 0
    %948 = vmatmul.mubr.bf16.gmra.mrb[0].mxu0 %v62
    %v949 = vpop.f32.mrb[0].mxu0
    %v950 = vadd.f32 %v198, %v949
    %v951 = vpop.f32.mrb[0].mxu0
    %v952 = vadd.f32 %v202, %v951
    %v953 = vpop.f32.mrb[0].mxu0
    %v954 = vpop.f32.mrb[0].mxu0
    %955 = vdwg.mxu0
    %956 = vmatprep.subr.bf16.mxu0 %v662
    %957 = vmatpush1.bf16.msra.mxu0 %v661
    %958 = vmatprep.subr.bf16.mxu0 %v678
    %959 = vmatpush1.bf16.msra.mxu0 %v677
    %960 = vmatprep.subr.bf16.mxu0 %v694
    %961 = vmatpush1.bf16.msra.mxu0 %v693
    %962 = vmatprep.subr.bf16.mxu0 %v710
    %963 = vmatpush1.bf16.msra.mxu0 %v709
    %964 = vmatprep.subr.bf16.mxu0 %v726
    %965 = vmatpush1.bf16.msra.mxu0 %v725
    %966 = vmatprep.subr.bf16.mxu0 %v742
    %967 = vmatpush1.bf16.msra.mxu0 %v741
    %968 = vmatprep.subr.bf16.mxu0 %v758
    %969 = vmatpush1.bf16.msra.mxu0 %v757
    %970 = vmatprep.subr.bf16.mxu0 %v774
    %971 = vmatpush1.bf16.msra.mxu0 %v773
    %972 = vmatprep.subr.bf16.mxu0 0
    %973 = vmatpush1.bf16.msra.mxu0 0
    %974 = vmatprep.subr.bf16.mxu0 0
    %975 = vmatpush1.bf16.msra.mxu0 0
    %976 = vmatprep.subr.bf16.mxu0 0
    %977 = vmatpush1.bf16.msra.mxu0 0
    %978 = vmatprep.subr.bf16.mxu0 0
    %979 = vmatpush1.bf16.msra.mxu0 0
    %980 = vmatprep.subr.bf16.mxu0 0
    %981 = vmatpush1.bf16.msra.mxu0 0
    %982 = vmatprep.subr.bf16.mxu0 0
    %983 = vmatpush1.bf16.msra.mxu0 0
    %984 = vmatprep.subr.bf16.mxu0 0
    %985 = vmatpush1.bf16.msra.mxu0 0
    %986 = vmatprep.subr.bf16.mxu0 0
    %987 = vmatpush1.bf16.msra.mxu0 0
    %988 = vmatprep.mubr.bf16.mxu0 0
    %989 = vmatmul.mubr.bf16.gmra.mrb[0].mxu0 %v62
    %v990 = vpop.f32.mrb[0].mxu0
    %v991 = vadd.f32 %v206, %v990
    %v992 = vpop.f32.mrb[0].mxu0
    %v993 = vadd.f32 %v210, %v992
    %v994 = vpop.f32.mrb[0].mxu0
    %v995 = vpop.f32.mrb[0].mxu0
    %996 = vdwg.mxu0
    %997 = vmatprep.subr.bf16.mxu0 %v664
    %998 = vmatpush1.bf16.msra.mxu0 %v663
    %999 = vmatprep.subr.bf16.mxu0 %v680
    %1000 = vmatpush1.bf16.msra.mxu0 %v679
    %1001 = vmatprep.subr.bf16.mxu0 %v696
    %1002 = vmatpush1.bf16.msra.mxu0 %v695
    %1003 = vmatprep.subr.bf16.mxu0 %v712
    %1004 = vmatpush1.bf16.msra.mxu0 %v711
    %1005 = vmatprep.subr.bf16.mxu0 %v728
    %1006 = vmatpush1.bf16.msra.mxu0 %v727
    %1007 = vmatprep.subr.bf16.mxu0 %v744
    %1008 = vmatpush1.bf16.msra.mxu0 %v743
    %1009 = vmatprep.subr.bf16.mxu0 %v760
    %1010 = vmatpush1.bf16.msra.mxu0 %v759
    %1011 = vmatprep.subr.bf16.mxu0 %v776
    %1012 = vmatpush1.bf16.msra.mxu0 %v775
    %1013 = vmatprep.subr.bf16.mxu0 0
    %1014 = vmatpush1.bf16.msra.mxu0 0
    %1015 = vmatprep.subr.bf16.mxu0 0
    %1016 = vmatpush1.bf16.msra.mxu0 0
    %1017 = vmatprep.subr.bf16.mxu0 0
    %1018 = vmatpush1.bf16.msra.mxu0 0
    %1019 = vmatprep.subr.bf16.mxu0 0
    %1020 = vmatpush1.bf16.msra.mxu0 0
    %1021 = vmatprep.subr.bf16.mxu0 0
    %1022 = vmatpush1.bf16.msra.mxu0 0
    %1023 = vmatprep.subr.bf16.mxu0 0
    %1024 = vmatpush1.bf16.msra.mxu0 0
    %1025 = vmatprep.subr.bf16.mxu0 0
    %1026 = vmatpush1.bf16.msra.mxu0 0
    %1027 = vmatprep.subr.bf16.mxu0 0
    %1028 = vmatpush1.bf16.msra.mxu0 0
    %1029 = vmatprep.mubr.bf16.mxu0 0
    %1030 = vmatmul.mubr.bf16.gmra.mrb[0].mxu0 %v62
    %v1031 = vpop.f32.mrb[0].mxu0
    %v1032 = vadd.f32 %v214, %v1031
    %v1033 = vpop.f32.mrb[0].mxu0
    %v1034 = vadd.f32 %v218, %v1033
    %v1035 = vpop.f32.mrb[0].mxu0
    %v1036 = vpop.f32.mrb[0].mxu0
    %1037 = vdwg.mxu0
    %1038 = vmatprep.subr.bf16.mxu0 %v666
    %1039 = vmatpush1.bf16.msra.mxu0 %v665
    %1040 = vmatprep.subr.bf16.mxu0 %v682
    %1041 = vmatpush1.bf16.msra.mxu0 %v681
    %1042 = vmatprep.subr.bf16.mxu0 %v698
    %1043 = vmatpush1.bf16.msra.mxu0 %v697
    %1044 = vmatprep.subr.bf16.mxu0 %v714
    %1045 = vmatpush1.bf16.msra.mxu0 %v713
    %1046 = vmatprep.subr.bf16.mxu0 %v730
    %1047 = vmatpush1.bf16.msra.mxu0 %v729
    %1048 = vmatprep.subr.bf16.mxu0 %v746
    %1049 = vmatpush1.bf16.msra.mxu0 %v745
    %1050 = vmatprep.subr.bf16.mxu0 %v762
    %1051 = vmatpush1.bf16.msra.mxu0 %v761
    %1052 = vmatprep.subr.bf16.mxu0 %v778
    %1053 = vmatpush1.bf16.msra.mxu0 %v777
    %1054 = vmatprep.subr.bf16.mxu0 0
    %1055 = vmatpush1.bf16.msra.mxu0 0
    %1056 = vmatprep.subr.bf16.mxu0 0
    %1057 = vmatpush1.bf16.msra.mxu0 0
    %1058 = vmatprep.subr.bf16.mxu0 0
    %1059 = vmatpush1.bf16.msra.mxu0 0
    %1060 = vmatprep.subr.bf16.mxu0 0
    %1061 = vmatpush1.bf16.msra.mxu0 0
    %1062 = vmatprep.subr.bf16.mxu0 0
    %1063 = vmatpush1.bf16.msra.mxu0 0
    %1064 = vmatprep.subr.bf16.mxu0 0
    %1065 = vmatpush1.bf16.msra.mxu0 0
    %1066 = vmatprep.subr.bf16.mxu0 0
    %1067 = vmatpush1.bf16.msra.mxu0 0
    %1068 = vmatprep.subr.bf16.mxu0 0
    %1069 = vmatpush1.bf16.msra.mxu0 0
    %1070 = vmatprep.mubr.bf16.mxu0 0
    %1071 = vmatmul.mubr.bf16.gmra.mrb[0].mxu0 %v62
    %v1072 = vpop.f32.mrb[0].mxu0
    %v1073 = vadd.f32 %v222, %v1072
    %v1074 = vpop.f32.mrb[0].mxu0
    %v1075 = vadd.f32 %v226, %v1074
    %v1076 = vpop.f32.mrb[0].mxu0
    %v1077 = vpop.f32.mrb[0].mxu0
    %1078 = vdwg.mxu0
    %1079 = vmatprep.subr.bf16.mxu0 %v668
    %1080 = vmatpush1.bf16.msra.mxu0 %v667
    %1081 = vmatprep.subr.bf16.mxu0 %v684
    %1082 = vmatpush1.bf16.msra.mxu0 %v683
    %1083 = vmatprep.subr.bf16.mxu0 %v700
    %1084 = vmatpush1.bf16.msra.mxu0 %v699
    %1085 = vmatprep.subr.bf16.mxu0 %v716
    %1086 = vmatpush1.bf16.msra.mxu0 %v715
    %1087 = vmatprep.subr.bf16.mxu0 %v732
    %1088 = vmatpush1.bf16.msra.mxu0 %v731
    %1089 = vmatprep.subr.bf16.mxu0 %v748
    %1090 = vmatpush1.bf16.msra.mxu0 %v747
    %1091 = vmatprep.subr.bf16.mxu0 %v764
    %1092 = vmatpush1.bf16.msra.mxu0 %v763
    %1093 = vmatprep.subr.bf16.mxu0 %v780
    %1094 = vmatpush1.bf16.msra.mxu0 %v779
    %1095 = vmatprep.subr.bf16.mxu0 0
    %1096 = vmatpush1.bf16.msra.mxu0 0
    %1097 = vmatprep.subr.bf16.mxu0 0
    %1098 = vmatpush1.bf16.msra.mxu0 0
    %1099 = vmatprep.subr.bf16.mxu0 0
    %1100 = vmatpush1.bf16.msra.mxu0 0
    %1101 = vmatprep.subr.bf16.mxu0 0
    %1102 = vmatpush1.bf16.msra.mxu0 0
    %1103 = vmatprep.subr.bf16.mxu0 0
    %1104 = vmatpush1.bf16.msra.mxu0 0
    %1105 = vmatprep.subr.bf16.mxu0 0
    %1106 = vmatpush1.bf16.msra.mxu0 0
    %1107 = vmatprep.subr.bf16.mxu0 0
    %1108 = vmatpush1.bf16.msra.mxu0 0
    %1109 = vmatprep.subr.bf16.mxu0 0
    %1110 = vmatpush1.bf16.msra.mxu0 0
    %1111 = vmatprep.mubr.bf16.mxu0 0
    %1112 = vmatmul.mubr.bf16.gmra.mrb[0].mxu0 %v62
    %v1113 = vpop.f32.mrb[0].mxu0
    %v1114 = vadd.f32 %v230, %v1113
    %v1115 = vpop.f32.mrb[0].mxu0
    %v1116 = vadd.f32 %v234, %v1115
    %v1117 = vpop.f32.mrb[0].mxu0
    %v1118 = vpop.f32.mrb[0].mxu0
    %1119 = vdwg.mxu0
    %1120 = vmatprep.subr.bf16.mxu0 %v670
    %1121 = vmatpush1.bf16.msra.mxu0 %v669
    %1122 = vmatprep.subr.bf16.mxu0 %v686
    %1123 = vmatpush1.bf16.msra.mxu0 %v685
    %1124 = vmatprep.subr.bf16.mxu0 %v702
    %1125 = vmatpush1.bf16.msra.mxu0 %v701
    %1126 = vmatprep.subr.bf16.mxu0 %v718
    %1127 = vmatpush1.bf16.msra.mxu0 %v717
    %1128 = vmatprep.subr.bf16.mxu0 %v734
    %1129 = vmatpush1.bf16.msra.mxu0 %v733
    %1130 = vmatprep.subr.bf16.mxu0 %v750
    %1131 = vmatpush1.bf16.msra.mxu0 %v749
    %1132 = vmatprep.subr.bf16.mxu0 %v766
    %1133 = vmatpush1.bf16.msra.mxu0 %v765
    %1134 = vmatprep.subr.bf16.mxu0 %v782
    %1135 = vmatpush1.bf16.msra.mxu0 %v781
    %1136 = vmatprep.subr.bf16.mxu0 0
    %1137 = vmatpush1.bf16.msra.mxu0 0
    %1138 = vmatprep.subr.bf16.mxu0 0
    %1139 = vmatpush1.bf16.msra.mxu0 0
    %1140 = vmatprep.subr.bf16.mxu0 0
    %1141 = vmatpush1.bf16.msra.mxu0 0
    %1142 = vmatprep.subr.bf16.mxu0 0
    %1143 = vmatpush1.bf16.msra.mxu0 0
    %1144 = vmatprep.subr.bf16.mxu0 0
    %1145 = vmatpush1.bf16.msra.mxu0 0
    %1146 = vmatprep.subr.bf16.mxu0 0
    %1147 = vmatpush1.bf16.msra.mxu0 0
    %1148 = vmatprep.subr.bf16.mxu0 0
    %1149 = vmatpush1.bf16.msra.mxu0 0
    %1150 = vmatprep.subr.bf16.mxu0 0
    %1151 = vmatpush1.bf16.msra.mxu0 0
    %1152 = vmatprep.mubr.bf16.mxu0 0
    %1153 = vmatmul.mubr.bf16.gmra.mrb[0].mxu0 %v62
    %v1154 = vpop.f32.mrb[0].mxu0
    %v1155 = vadd.f32 %v238, %v1154
    %v1156 = vpop.f32.mrb[0].mxu0
    %v1157 = vadd.f32 %v242, %v1156
    %v1158 = vpop.f32.mrb[0].mxu0
    %v1159 = vpop.f32.mrb[0].mxu0
    %1160 = vdwg.mxu0
    %1161 = vmatprep.subr.bf16.mxu0 %v672
    %1162 = vmatpush1.bf16.msra.mxu0 %v671
    %1163 = vmatprep.subr.bf16.mxu0 %v688
    %1164 = vmatpush1.bf16.msra.mxu0 %v687
    %1165 = vmatprep.subr.bf16.mxu0 %v704
    %1166 = vmatpush1.bf16.msra.mxu0 %v703
    %1167 = vmatprep.subr.bf16.mxu0 %v720
    %1168 = vmatpush1.bf16.msra.mxu0 %v719
    %1169 = vmatprep.subr.bf16.mxu0 %v736
    %1170 = vmatpush1.bf16.msra.mxu0 %v735
    %1171 = vmatprep.subr.bf16.mxu0 %v752
    %1172 = vmatpush1.bf16.msra.mxu0 %v751
    %1173 = vmatprep.subr.bf16.mxu0 %v768
    %1174 = vmatpush1.bf16.msra.mxu0 %v767
    %1175 = vmatprep.subr.bf16.mxu0 %v784
    %1176 = vmatpush1.bf16.msra.mxu0 %v783
    %1177 = vmatprep.subr.bf16.mxu0 0
    %1178 = vmatpush1.bf16.msra.mxu0 0
    %1179 = vmatprep.subr.bf16.mxu0 0
    %1180 = vmatpush1.bf16.msra.mxu0 0
    %1181 = vmatprep.subr.bf16.mxu0 0
    %1182 = vmatpush1.bf16.msra.mxu0 0
    %1183 = vmatprep.subr.bf16.mxu0 0
    %1184 = vmatpush1.bf16.msra.mxu0 0
    %1185 = vmatprep.subr.bf16.mxu0 0
    %1186 = vmatpush1.bf16.msra.mxu0 0
    %1187 = vmatprep.subr.bf16.mxu0 0
    %1188 = vmatpush1.bf16.msra.mxu0 0
    %1189 = vmatprep.subr.bf16.mxu0 0
    %1190 = vmatpush1.bf16.msra.mxu0 0
    %1191 = vmatprep.subr.bf16.mxu0 0
    %1192 = vmatpush1.bf16.msra.mxu0 0
    %1193 = vmatprep.mubr.bf16.mxu0 0
    %1194 = vmatmul.mubr.bf16.gmra.mrb[0].mxu0 %v62
    %v1195 = vpop.f32.mrb[0].mxu0
    %v1196 = vadd.f32 %v246, %v1195
    %v1197 = vpop.f32.mrb[0].mxu0
    %v1198 = vadd.f32 %v250, %v1197
    %v1199 = vpop.f32.mrb[0].mxu0
    %v1200 = vpop.f32.mrb[0].mxu0
    %1201 = vdwg.mxu0
    %1202 = vmatprep.subr.bf16.mxu0 %v674
    %1203 = vmatpush1.bf16.msra.mxu0 %v673
    %1204 = vmatprep.subr.bf16.mxu0 %v690
    %1205 = vmatpush1.bf16.msra.mxu0 %v689
    %1206 = vmatprep.subr.bf16.mxu0 %v706
    %1207 = vmatpush1.bf16.msra.mxu0 %v705
    %1208 = vmatprep.subr.bf16.mxu0 %v722
    %1209 = vmatpush1.bf16.msra.mxu0 %v721
    %1210 = vmatprep.subr.bf16.mxu0 %v738
    %1211 = vmatpush1.bf16.msra.mxu0 %v737
    %1212 = vmatprep.subr.bf16.mxu0 %v754
    %1213 = vmatpush1.bf16.msra.mxu0 %v753
    %1214 = vmatprep.subr.bf16.mxu0 %v770
    %1215 = vmatpush1.bf16.msra.mxu0 %v769
    %1216 = vmatprep.subr.bf16.mxu0 %v786
    %1217 = vmatpush1.bf16.msra.mxu0 %v785
    %1218 = vmatprep.subr.bf16.mxu0 0
    %1219 = vmatpush1.bf16.msra.mxu0 0
    %1220 = vmatprep.subr.bf16.mxu0 0
    %1221 = vmatpush1.bf16.msra.mxu0 0
    %1222 = vmatprep.subr.bf16.mxu0 0
    %1223 = vmatpush1.bf16.msra.mxu0 0
    %1224 = vmatprep.subr.bf16.mxu0 0
    %1225 = vmatpush1.bf16.msra.mxu0 0
    %1226 = vmatprep.subr.bf16.mxu0 0
    %1227 = vmatpush1.bf16.msra.mxu0 0
    %1228 = vmatprep.subr.bf16.mxu0 0
    %1229 = vmatpush1.bf16.msra.mxu0 0
    %1230 = vmatprep.subr.bf16.mxu0 0
    %1231 = vmatpush1.bf16.msra.mxu0 0
    %1232 = vmatprep.subr.bf16.mxu0 0
    %1233 = vmatpush1.bf16.msra.mxu0 0
    %1234 = vmatprep.mubr.bf16.mxu0 0
    %1235 = vmatmul.mubr.bf16.gmra.mrb[0].mxu0 %v62
    %v1236 = vpop.f32.mrb[0].mxu0
    %v1237 = vadd.f32 %v254, %v1236
    %v1238 = vpop.f32.mrb[0].mxu0
    %v1239 = vadd.f32 %v258, %v1238
    %v1240 = vpop.f32.mrb[0].mxu0
    %v1241 = vpop.f32.mrb[0].mxu0
    %1242 = vdwg.mxu0
    %v1243 = vpack.c.bf16 %v950, %v950
    %v1244 = vpack.c.bf16 %v952, %v952
    %v1245 = vpack.c.bf16 %v991, %v991
    %v1246 = vpack.c.bf16 %v993, %v993
    %v1247 = vpack.c.bf16 %v1032, %v1032
    %v1248 = vpack.c.bf16 %v1034, %v1034
    %v1249 = vpack.c.bf16 %v1073, %v1073
    %v1250 = vpack.c.bf16 %v1075, %v1075
    %v1251 = vpack.c.bf16 %v1114, %v1114
    %v1252 = vpack.c.bf16 %v1116, %v1116
    %v1253 = vpack.c.bf16 %v1155, %v1155
    %v1254 = vpack.c.bf16 %v1157, %v1157
    %v1255 = vpack.c.bf16 %v1196, %v1196
    %v1256 = vpack.c.bf16 %v1198, %v1198
    %v1257 = vpack.c.bf16 %v1237, %v1237
    %v1258 = vpack.c.bf16 %v1239, %v1239
    %v1259 = vld [vmem:[#allocation5] sm:$0xff]
    %v1260 = vld [vmem:[#allocation5 + $0x8] sm:$0xff]
    %v1261 = vld [vmem:[#allocation5 + $0x10] sm:$0xff]
    %v1262 = vld [vmem:[#allocation5 + $0x18] sm:$0xff]
    %v1263 = vld [vmem:[#allocation5 + $0x20] sm:$0xff]
    %v1264 = vld [vmem:[#allocation5 + $0x28] sm:$0xff]
    %v1265 = vld [vmem:[#allocation5 + $0x30] sm:$0xff]
    %v1266 = vld [vmem:[#allocation5 + $0x38] sm:$0xff]
    %v1267 = vld [vmem:[#allocation5 + $0x40] sm:$0xff]
    %v1268 = vld [vmem:[#allocation5 + $0x48] sm:$0xff]
    %v1269 = vld [vmem:[#allocation5 + $0x50] sm:$0xff]
    %v1270 = vld [vmem:[#allocation5 + $0x58] sm:$0xff]
    %v1271 = vld [vmem:[#allocation5 + $0x60] sm:$0xff]
    %v1272 = vld [vmem:[#allocation5 + $0x68] sm:$0xff]
    %v1273 = vld [vmem:[#allocation5 + $0x70] sm:$0xff]
    %v1274 = vld [vmem:[#allocation5 + $0x78] sm:$0xff]
    %v1275 = vld [vmem:[#allocation5 + $0x80] sm:$0xff]
    %v1276 = vld [vmem:[#allocation5 + $0x88] sm:$0xff]
    %v1277 = vld [vmem:[#allocation5 + $0x90] sm:$0xff]
    %v1278 = vld [vmem:[#allocation5 + $0x98] sm:$0xff]
    %v1279 = vld [vmem:[#allocation5 + $0xa0] sm:$0xff]
    %v1280 = vld [vmem:[#allocation5 + $0xa8] sm:$0xff]
    %v1281 = vld [vmem:[#allocation5 + $0xb0] sm:$0xff]
    %v1282 = vld [vmem:[#allocation5 + $0xb8] sm:$0xff]
    %v1283 = vld [vmem:[#allocation5 + $0xc0] sm:$0xff]
    %v1284 = vld [vmem:[#allocation5 + $0xc8] sm:$0xff]
    %v1285 = vld [vmem:[#allocation5 + $0xd0] sm:$0xff]
    %v1286 = vld [vmem:[#allocation5 + $0xd8] sm:$0xff]
    %v1287 = vld [vmem:[#allocation5 + $0xe0] sm:$0xff]
    %v1288 = vld [vmem:[#allocation5 + $0xe8] sm:$0xff]
    %v1289 = vld [vmem:[#allocation5 + $0xf0] sm:$0xff]
    %v1290 = vld [vmem:[#allocation5 + $0xf8] sm:$0xff]
    %v1291 = vld [vmem:[#allocation5 + $0x100] sm:$0xff]
    %v1292 = vld [vmem:[#allocation5 + $0x108] sm:$0xff]
    %v1293 = vld [vmem:[#allocation5 + $0x110] sm:$0xff]
    %v1294 = vld [vmem:[#allocation5 + $0x118] sm:$0xff]
    %v1295 = vld [vmem:[#allocation5 + $0x120] sm:$0xff]
    %v1296 = vld [vmem:[#allocation5 + $0x128] sm:$0xff]
    %v1297 = vld [vmem:[#allocation5 + $0x130] sm:$0xff]
    %v1298 = vld [vmem:[#allocation5 + $0x138] sm:$0xff]
    %v1299 = vld [vmem:[#allocation5 + $0x140] sm:$0xff]
    %v1300 = vld [vmem:[#allocation5 + $0x148] sm:$0xff]
    %v1301 = vld [vmem:[#allocation5 + $0x150] sm:$0xff]
    %v1302 = vld [vmem:[#allocation5 + $0x158] sm:$0xff]
    %v1303 = vld [vmem:[#allocation5 + $0x160] sm:$0xff]
    %v1304 = vld [vmem:[#allocation5 + $0x168] sm:$0xff]
    %v1305 = vld [vmem:[#allocation5 + $0x170] sm:$0xff]
    %v1306 = vld [vmem:[#allocation5 + $0x178] sm:$0xff]
    %v1307 = vld [vmem:[#allocation5 + $0x180] sm:$0xff]
    %v1308 = vld [vmem:[#allocation5 + $0x188] sm:$0xff]
    %v1309 = vld [vmem:[#allocation5 + $0x190] sm:$0xff]
    %v1310 = vld [vmem:[#allocation5 + $0x198] sm:$0xff]
    %v1311 = vld [vmem:[#allocation5 + $0x1a0] sm:$0xff]
    %v1312 = vld [vmem:[#allocation5 + $0x1a8] sm:$0xff]
    %v1313 = vld [vmem:[#allocation5 + $0x1b0] sm:$0xff]
    %v1314 = vld [vmem:[#allocation5 + $0x1b8] sm:$0xff]
    %v1315 = vld [vmem:[#allocation5 + $0x1c0] sm:$0xff]
    %v1316 = vld [vmem:[#allocation5 + $0x1c8] sm:$0xff]
    %v1317 = vld [vmem:[#allocation5 + $0x1d0] sm:$0xff]
    %v1318 = vld [vmem:[#allocation5 + $0x1d8] sm:$0xff]
    %v1319 = vld [vmem:[#allocation5 + $0x1e0] sm:$0xff]
    %v1320 = vld [vmem:[#allocation5 + $0x1e8] sm:$0xff]
    %v1321 = vld [vmem:[#allocation5 + $0x1f0] sm:$0xff]
    %v1322 = vld [vmem:[#allocation5 + $0x1f8] sm:$0xff]
    %v1323 = vld [vmem:[#allocation5 + $0x200] sm:$0xff]
    %v1324 = vld [vmem:[#allocation5 + $0x208] sm:$0xff]
    %v1325 = vld [vmem:[#allocation5 + $0x210] sm:$0xff]
    %v1326 = vld [vmem:[#allocation5 + $0x218] sm:$0xff]
    %v1327 = vld [vmem:[#allocation5 + $0x220] sm:$0xff]
    %v1328 = vld [vmem:[#allocation5 + $0x228] sm:$0xff]
    %v1329 = vld [vmem:[#allocation5 + $0x230] sm:$0xff]
    %v1330 = vld [vmem:[#allocation5 + $0x238] sm:$0xff]
    %v1331 = vld [vmem:[#allocation5 + $0x240] sm:$0xff]
    %v1332 = vld [vmem:[#allocation5 + $0x248] sm:$0xff]
    %v1333 = vld [vmem:[#allocation5 + $0x250] sm:$0xff]
    %v1334 = vld [vmem:[#allocation5 + $0x258] sm:$0xff]
    %v1335 = vld [vmem:[#allocation5 + $0x260] sm:$0xff]
    %v1336 = vld [vmem:[#allocation5 + $0x268] sm:$0xff]
    %v1337 = vld [vmem:[#allocation5 + $0x270] sm:$0xff]
    %v1338 = vld [vmem:[#allocation5 + $0x278] sm:$0xff]
    %v1339 = vld [vmem:[#allocation5 + $0x280] sm:$0xff]
    %v1340 = vld [vmem:[#allocation5 + $0x288] sm:$0xff]
    %v1341 = vld [vmem:[#allocation5 + $0x290] sm:$0xff]
    %v1342 = vld [vmem:[#allocation5 + $0x298] sm:$0xff]
    %v1343 = vld [vmem:[#allocation5 + $0x2a0] sm:$0xff]
    %v1344 = vld [vmem:[#allocation5 + $0x2a8] sm:$0xff]
    %v1345 = vld [vmem:[#allocation5 + $0x2b0] sm:$0xff]
    %v1346 = vld [vmem:[#allocation5 + $0x2b8] sm:$0xff]
    %v1347 = vld [vmem:[#allocation5 + $0x2c0] sm:$0xff]
    %v1348 = vld [vmem:[#allocation5 + $0x2c8] sm:$0xff]
    %v1349 = vld [vmem:[#allocation5 + $0x2d0] sm:$0xff]
    %v1350 = vld [vmem:[#allocation5 + $0x2d8] sm:$0xff]
    %v1351 = vld [vmem:[#allocation5 + $0x2e0] sm:$0xff]
    %v1352 = vld [vmem:[#allocation5 + $0x2e8] sm:$0xff]
    %v1353 = vld [vmem:[#allocation5 + $0x2f0] sm:$0xff]
    %v1354 = vld [vmem:[#allocation5 + $0x2f8] sm:$0xff]
    %v1355 = vld [vmem:[#allocation5 + $0x300] sm:$0xff]
    %v1356 = vld [vmem:[#allocation5 + $0x308] sm:$0xff]
    %v1357 = vld [vmem:[#allocation5 + $0x310] sm:$0xff]
    %v1358 = vld [vmem:[#allocation5 + $0x318] sm:$0xff]
    %v1359 = vld [vmem:[#allocation5 + $0x320] sm:$0xff]
    %v1360 = vld [vmem:[#allocation5 + $0x328] sm:$0xff]
    %v1361 = vld [vmem:[#allocation5 + $0x330] sm:$0xff]
    %v1362 = vld [vmem:[#allocation5 + $0x338] sm:$0xff]
    %v1363 = vld [vmem:[#allocation5 + $0x340] sm:$0xff]
    %v1364 = vld [vmem:[#allocation5 + $0x348] sm:$0xff]
    %v1365 = vld [vmem:[#allocation5 + $0x350] sm:$0xff]
    %v1366 = vld [vmem:[#allocation5 + $0x358] sm:$0xff]
    %v1367 = vld [vmem:[#allocation5 + $0x360] sm:$0xff]
    %v1368 = vld [vmem:[#allocation5 + $0x368] sm:$0xff]
    %v1369 = vld [vmem:[#allocation5 + $0x370] sm:$0xff]
    %v1370 = vld [vmem:[#allocation5 + $0x378] sm:$0xff]
    %v1371 = vld [vmem:[#allocation5 + $0x380] sm:$0xff]
    %v1372 = vld [vmem:[#allocation5 + $0x388] sm:$0xff]
    %v1373 = vld [vmem:[#allocation5 + $0x390] sm:$0xff]
    %v1374 = vld [vmem:[#allocation5 + $0x398] sm:$0xff]
    %v1375 = vld [vmem:[#allocation5 + $0x3a0] sm:$0xff]
    %v1376 = vld [vmem:[#allocation5 + $0x3a8] sm:$0xff]
    %v1377 = vld [vmem:[#allocation5 + $0x3b0] sm:$0xff]
    %v1378 = vld [vmem:[#allocation5 + $0x3b8] sm:$0xff]
    %v1379 = vld [vmem:[#allocation5 + $0x3c0] sm:$0xff]
    %v1380 = vld [vmem:[#allocation5 + $0x3c8] sm:$0xff]
    %v1381 = vld [vmem:[#allocation5 + $0x3d0] sm:$0xff]
    %v1382 = vld [vmem:[#allocation5 + $0x3d8] sm:$0xff]
    %v1383 = vld [vmem:[#allocation5 + $0x3e0] sm:$0xff]
    %v1384 = vld [vmem:[#allocation5 + $0x3e8] sm:$0xff]
    %v1385 = vld [vmem:[#allocation5 + $0x3f0] sm:$0xff]
    %v1386 = vld [vmem:[#allocation5 + $0x3f8] sm:$0xff]
    %v1387 = vld [vmem:[#allocation5 + $0x400] sm:$0xff]
    %v1388 = vld [vmem:[#allocation5 + $0x408] sm:$0xff]
    %v1389 = vld [vmem:[#allocation5 + $0x410] sm:$0xff]
    %v1390 = vld [vmem:[#allocation5 + $0x418] sm:$0xff]
    %v1391 = vld [vmem:[#allocation5 + $0x420] sm:$0xff]
    %v1392 = vld [vmem:[#allocation5 + $0x428] sm:$0xff]
    %v1393 = vld [vmem:[#allocation5 + $0x430] sm:$0xff]
    %v1394 = vld [vmem:[#allocation5 + $0x438] sm:$0xff]
    %v1395 = vld [vmem:[#allocation5 + $0x440] sm:$0xff]
    %v1396 = vld [vmem:[#allocation5 + $0x448] sm:$0xff]
    %v1397 = vld [vmem:[#allocation5 + $0x450] sm:$0xff]
    %v1398 = vld [vmem:[#allocation5 + $0x458] sm:$0xff]
    %v1399 = vld [vmem:[#allocation5 + $0x460] sm:$0xff]
    %v1400 = vld [vmem:[#allocation5 + $0x468] sm:$0xff]
    %v1401 = vld [vmem:[#allocation5 + $0x470] sm:$0xff]
    %v1402 = vld [vmem:[#allocation5 + $0x478] sm:$0xff]
    %v1403 = vld [vmem:[#allocation5 + $0x480] sm:$0xff]
    %v1404 = vld [vmem:[#allocation5 + $0x488] sm:$0xff]
    %v1405 = vld [vmem:[#allocation5 + $0x490] sm:$0xff]
    %v1406 = vld [vmem:[#allocation5 + $0x498] sm:$0xff]
    %v1407 = vld [vmem:[#allocation5 + $0x4a0] sm:$0xff]
    %v1408 = vld [vmem:[#allocation5 + $0x4a8] sm:$0xff]
    %v1409 = vld [vmem:[#allocation5 + $0x4b0] sm:$0xff]
    %v1410 = vld [vmem:[#allocation5 + $0x4b8] sm:$0xff]
    %v1411 = vld [vmem:[#allocation5 + $0x4c0] sm:$0xff]
    %v1412 = vld [vmem:[#allocation5 + $0x4c8] sm:$0xff]
    %v1413 = vld [vmem:[#allocation5 + $0x4d0] sm:$0xff]
    %v1414 = vld [vmem:[#allocation5 + $0x4d8] sm:$0xff]
    %v1415 = vld [vmem:[#allocation5 + $0x4e0] sm:$0xff]
    %v1416 = vld [vmem:[#allocation5 + $0x4e8] sm:$0xff]
    %v1417 = vld [vmem:[#allocation5 + $0x4f0] sm:$0xff]
    %v1418 = vld [vmem:[#allocation5 + $0x4f8] sm:$0xff]
    %v1419 = vld [vmem:[#allocation5 + $0x500] sm:$0xff]
    %v1420 = vld [vmem:[#allocation5 + $0x508] sm:$0xff]
    %v1421 = vld [vmem:[#allocation5 + $0x510] sm:$0xff]
    %v1422 = vld [vmem:[#allocation5 + $0x518] sm:$0xff]
    %v1423 = vld [vmem:[#allocation5 + $0x520] sm:$0xff]
    %v1424 = vld [vmem:[#allocation5 + $0x528] sm:$0xff]
    %v1425 = vld [vmem:[#allocation5 + $0x530] sm:$0xff]
    %v1426 = vld [vmem:[#allocation5 + $0x538] sm:$0xff]
    %v1427 = vld [vmem:[#allocation5 + $0x540] sm:$0xff]
    %v1428 = vld [vmem:[#allocation5 + $0x548] sm:$0xff]
    %v1429 = vld [vmem:[#allocation5 + $0x550] sm:$0xff]
    %v1430 = vld [vmem:[#allocation5 + $0x558] sm:$0xff]
    %v1431 = vld [vmem:[#allocation5 + $0x560] sm:$0xff]
    %v1432 = vld [vmem:[#allocation5 + $0x568] sm:$0xff]
    %v1433 = vld [vmem:[#allocation5 + $0x570] sm:$0xff]
    %v1434 = vld [vmem:[#allocation5 + $0x578] sm:$0xff]
    %v1435 = vld [vmem:[#allocation5 + $0x580] sm:$0xff]
    %v1436 = vld [vmem:[#allocation5 + $0x588] sm:$0xff]
    %v1437 = vld [vmem:[#allocation5 + $0x590] sm:$0xff]
    %v1438 = vld [vmem:[#allocation5 + $0x598] sm:$0xff]
    %v1439 = vld [vmem:[#allocation5 + $0x5a0] sm:$0xff]
    %v1440 = vld [vmem:[#allocation5 + $0x5a8] sm:$0xff]
    %v1441 = vld [vmem:[#allocation5 + $0x5b0] sm:$0xff]
    %v1442 = vld [vmem:[#allocation5 + $0x5b8] sm:$0xff]
    %v1443 = vld [vmem:[#allocation5 + $0x5c0] sm:$0xff]
    %v1444 = vld [vmem:[#allocation5 + $0x5c8] sm:$0xff]
    %v1445 = vld [vmem:[#allocation5 + $0x5d0] sm:$0xff]
    %v1446 = vld [vmem:[#allocation5 + $0x5d8] sm:$0xff]
    %v1447 = vld [vmem:[#allocation5 + $0x5e0] sm:$0xff]
    %v1448 = vld [vmem:[#allocation5 + $0x5e8] sm:$0xff]
    %v1449 = vld [vmem:[#allocation5 + $0x5f0] sm:$0xff]
    %v1450 = vld [vmem:[#allocation5 + $0x5f8] sm:$0xff]
    %v1451 = vld [vmem:[#allocation5 + $0x600] sm:$0xff]
    %v1452 = vld [vmem:[#allocation5 + $0x608] sm:$0xff]
    %v1453 = vld [vmem:[#allocation5 + $0x610] sm:$0xff]
    %v1454 = vld [vmem:[#allocation5 + $0x618] sm:$0xff]
    %v1455 = vld [vmem:[#allocation5 + $0x620] sm:$0xff]
    %v1456 = vld [vmem:[#allocation5 + $0x628] sm:$0xff]
    %v1457 = vld [vmem:[#allocation5 + $0x630] sm:$0xff]
    %v1458 = vld [vmem:[#allocation5 + $0x638] sm:$0xff]
    %v1459 = vld [vmem:[#allocation5 + $0x640] sm:$0xff]
    %v1460 = vld [vmem:[#allocation5 + $0x648] sm:$0xff]
    %v1461 = vld [vmem:[#allocation5 + $0x650] sm:$0xff]
    %v1462 = vld [vmem:[#allocation5 + $0x658] sm:$0xff]
    %v1463 = vld [vmem:[#allocation5 + $0x660] sm:$0xff]
    %v1464 = vld [vmem:[#allocation5 + $0x668] sm:$0xff]
    %v1465 = vld [vmem:[#allocation5 + $0x670] sm:$0xff]
    %v1466 = vld [vmem:[#allocation5 + $0x678] sm:$0xff]
    %v1467 = vld [vmem:[#allocation5 + $0x680] sm:$0xff]
    %v1468 = vld [vmem:[#allocation5 + $0x688] sm:$0xff]
    %v1469 = vld [vmem:[#allocation5 + $0x690] sm:$0xff]
    %v1470 = vld [vmem:[#allocation5 + $0x698] sm:$0xff]
    %v1471 = vld [vmem:[#allocation5 + $0x6a0] sm:$0xff]
    %v1472 = vld [vmem:[#allocation5 + $0x6a8] sm:$0xff]
    %v1473 = vld [vmem:[#allocation5 + $0x6b0] sm:$0xff]
    %v1474 = vld [vmem:[#allocation5 + $0x6b8] sm:$0xff]
    %v1475 = vld [vmem:[#allocation5 + $0x6c0] sm:$0xff]
    %v1476 = vld [vmem:[#allocation5 + $0x6c8] sm:$0xff]
    %v1477 = vld [vmem:[#allocation5 + $0x6d0] sm:$0xff]
    %v1478 = vld [vmem:[#allocation5 + $0x6d8] sm:$0xff]
    %v1479 = vld [vmem:[#allocation5 + $0x6e0] sm:$0xff]
    %v1480 = vld [vmem:[#allocation5 + $0x6e8] sm:$0xff]
    %v1481 = vld [vmem:[#allocation5 + $0x6f0] sm:$0xff]
    %v1482 = vld [vmem:[#allocation5 + $0x6f8] sm:$0xff]
    %v1483 = vld [vmem:[#allocation5 + $0x700] sm:$0xff]
    %v1484 = vld [vmem:[#allocation5 + $0x708] sm:$0xff]
    %v1485 = vld [vmem:[#allocation5 + $0x710] sm:$0xff]
    %v1486 = vld [vmem:[#allocation5 + $0x718] sm:$0xff]
    %v1487 = vld [vmem:[#allocation5 + $0x720] sm:$0xff]
    %v1488 = vld [vmem:[#allocation5 + $0x728] sm:$0xff]
    %v1489 = vld [vmem:[#allocation5 + $0x730] sm:$0xff]
    %v1490 = vld [vmem:[#allocation5 + $0x738] sm:$0xff]
    %v1491 = vld [vmem:[#allocation5 + $0x740] sm:$0xff]
    %v1492 = vld [vmem:[#allocation5 + $0x748] sm:$0xff]
    %v1493 = vld [vmem:[#allocation5 + $0x750] sm:$0xff]
    %v1494 = vld [vmem:[#allocation5 + $0x758] sm:$0xff]
    %v1495 = vld [vmem:[#allocation5 + $0x760] sm:$0xff]
    %v1496 = vld [vmem:[#allocation5 + $0x768] sm:$0xff]
    %v1497 = vld [vmem:[#allocation5 + $0x770] sm:$0xff]
    %v1498 = vld [vmem:[#allocation5 + $0x778] sm:$0xff]
    %v1499 = vld [vmem:[#allocation5 + $0x780] sm:$0xff]
    %v1500 = vld [vmem:[#allocation5 + $0x788] sm:$0xff]
    %v1501 = vld [vmem:[#allocation5 + $0x790] sm:$0xff]
    %v1502 = vld [vmem:[#allocation5 + $0x798] sm:$0xff]
    %v1503 = vld [vmem:[#allocation5 + $0x7a0] sm:$0xff]
    %v1504 = vld [vmem:[#allocation5 + $0x7a8] sm:$0xff]
    %v1505 = vld [vmem:[#allocation5 + $0x7b0] sm:$0xff]
    %v1506 = vld [vmem:[#allocation5 + $0x7b8] sm:$0xff]
    %v1507 = vld [vmem:[#allocation5 + $0x7c0] sm:$0xff]
    %v1508 = vld [vmem:[#allocation5 + $0x7c8] sm:$0xff]
    %v1509 = vld [vmem:[#allocation5 + $0x7d0] sm:$0xff]
    %v1510 = vld [vmem:[#allocation5 + $0x7d8] sm:$0xff]
    %v1511 = vld [vmem:[#allocation5 + $0x7e0] sm:$0xff]
    %v1512 = vld [vmem:[#allocation5 + $0x7e8] sm:$0xff]
    %v1513 = vld [vmem:[#allocation5 + $0x7f0] sm:$0xff]
    %v1514 = vld [vmem:[#allocation5 + $0x7f8] sm:$0xff]
    %v1515 = vld [vmem:[%s4] sm:$0x3]
    %v1517 = vlaneseq
    %v1518 = vshrl.u32 %v1517, 7
    %v1519 = vsub.s32 0, %v1518
    %v1520 = vrot.slane %v1515, %v1519
    %v1521 = vlaneseq
    %v1522 = vshrl.u32 %v1521, 7
    %v1523 = vsub.s32 1, %v1522
    %v1524 = vrot.slane %v1515, %v1523
    %v1783 = vunpack.c.l.b16 %v1259
    %v1784 = vunpack.c.h.b16 %v1259
    %v1785 = vunpack.c.l.b16 %v1260
    %v1786 = vunpack.c.h.b16 %v1260
    %v1787 = vunpack.c.l.b16 %v1261
    %v1788 = vunpack.c.h.b16 %v1261
    %v1789 = vunpack.c.l.b16 %v1262
    %v1790 = vunpack.c.h.b16 %v1262
    %v1791 = vunpack.c.l.b16 %v1263
    %v1792 = vunpack.c.h.b16 %v1263
    %v1793 = vunpack.c.l.b16 %v1264
    %v1794 = vunpack.c.h.b16 %v1264
    %v1795 = vunpack.c.l.b16 %v1265
    %v1796 = vunpack.c.h.b16 %v1265
    %v1797 = vunpack.c.l.b16 %v1266
    %v1798 = vunpack.c.h.b16 %v1266
    %v1799 = vunpack.c.l.b16 %v1267
    %v1800 = vunpack.c.h.b16 %v1267
    %v1801 = vunpack.c.l.b16 %v1268
    %v1802 = vunpack.c.h.b16 %v1268
    %v1803 = vunpack.c.l.b16 %v1269
    %v1804 = vunpack.c.h.b16 %v1269
    %v1805 = vunpack.c.l.b16 %v1270
    %v1806 = vunpack.c.h.b16 %v1270
    %v1807 = vunpack.c.l.b16 %v1271
    %v1808 = vunpack.c.h.b16 %v1271
    %v1809 = vunpack.c.l.b16 %v1272
    %v1810 = vunpack.c.h.b16 %v1272
    %v1811 = vunpack.c.l.b16 %v1273
    %v1812 = vunpack.c.h.b16 %v1273
    %v1813 = vunpack.c.l.b16 %v1274
    %v1814 = vunpack.c.h.b16 %v1274
    %v1815 = vunpack.c.l.b16 %v1275
    %v1816 = vunpack.c.h.b16 %v1275
    %v1817 = vunpack.c.l.b16 %v1276
    %v1818 = vunpack.c.h.b16 %v1276
    %v1819 = vunpack.c.l.b16 %v1277
    %v1820 = vunpack.c.h.b16 %v1277
    %v1821 = vunpack.c.l.b16 %v1278
    %v1822 = vunpack.c.h.b16 %v1278
    %v1823 = vunpack.c.l.b16 %v1279
    %v1824 = vunpack.c.h.b16 %v1279
    %v1825 = vunpack.c.l.b16 %v1280
    %v1826 = vunpack.c.h.b16 %v1280
    %v1827 = vunpack.c.l.b16 %v1281
    %v1828 = vunpack.c.h.b16 %v1281
    %v1829 = vunpack.c.l.b16 %v1282
    %v1830 = vunpack.c.h.b16 %v1282
    %v1831 = vunpack.c.l.b16 %v1283
    %v1832 = vunpack.c.h.b16 %v1283
    %v1833 = vunpack.c.l.b16 %v1284
    %v1834 = vunpack.c.h.b16 %v1284
    %v1835 = vunpack.c.l.b16 %v1285
    %v1836 = vunpack.c.h.b16 %v1285
    %v1837 = vunpack.c.l.b16 %v1286
    %v1838 = vunpack.c.h.b16 %v1286
    %v1839 = vunpack.c.l.b16 %v1287
    %v1840 = vunpack.c.h.b16 %v1287
    %v1841 = vunpack.c.l.b16 %v1288
    %v1842 = vunpack.c.h.b16 %v1288
    %v1843 = vunpack.c.l.b16 %v1289
    %v1844 = vunpack.c.h.b16 %v1289
    %v1845 = vunpack.c.l.b16 %v1290
    %v1846 = vunpack.c.h.b16 %v1290
    %v1847 = vunpack.c.l.b16 %v1291
    %v1848 = vunpack.c.h.b16 %v1291
    %v1849 = vunpack.c.l.b16 %v1292
    %v1850 = vunpack.c.h.b16 %v1292
    %v1851 = vunpack.c.l.b16 %v1293
    %v1852 = vunpack.c.h.b16 %v1293
    %v1853 = vunpack.c.l.b16 %v1294
    %v1854 = vunpack.c.h.b16 %v1294
    %v1855 = vunpack.c.l.b16 %v1295
    %v1856 = vunpack.c.h.b16 %v1295
    %v1857 = vunpack.c.l.b16 %v1296
    %v1858 = vunpack.c.h.b16 %v1296
    %v1859 = vunpack.c.l.b16 %v1297
    %v1860 = vunpack.c.h.b16 %v1297
    %v1861 = vunpack.c.l.b16 %v1298
    %v1862 = vunpack.c.h.b16 %v1298
    %v1863 = vunpack.c.l.b16 %v1299
    %v1864 = vunpack.c.h.b16 %v1299
    %v1865 = vunpack.c.l.b16 %v1300
    %v1866 = vunpack.c.h.b16 %v1300
    %v1867 = vunpack.c.l.b16 %v1301
    %v1868 = vunpack.c.h.b16 %v1301
    %v1869 = vunpack.c.l.b16 %v1302
    %v1870 = vunpack.c.h.b16 %v1302
    %v1871 = vunpack.c.l.b16 %v1303
    %v1872 = vunpack.c.h.b16 %v1303
    %v1873 = vunpack.c.l.b16 %v1304
    %v1874 = vunpack.c.h.b16 %v1304
    %v1875 = vunpack.c.l.b16 %v1305
    %v1876 = vunpack.c.h.b16 %v1305
    %v1877 = vunpack.c.l.b16 %v1306
    %v1878 = vunpack.c.h.b16 %v1306
    %v1879 = vunpack.c.l.b16 %v1307
    %v1880 = vunpack.c.h.b16 %v1307
    %v1881 = vunpack.c.l.b16 %v1308
    %v1882 = vunpack.c.h.b16 %v1308
    %v1883 = vunpack.c.l.b16 %v1309
    %v1884 = vunpack.c.h.b16 %v1309
    %v1885 = vunpack.c.l.b16 %v1310
    %v1886 = vunpack.c.h.b16 %v1310
    %v1887 = vunpack.c.l.b16 %v1311
    %v1888 = vunpack.c.h.b16 %v1311
    %v1889 = vunpack.c.l.b16 %v1312
    %v1890 = vunpack.c.h.b16 %v1312
    %v1891 = vunpack.c.l.b16 %v1313
    %v1892 = vunpack.c.h.b16 %v1313
    %v1893 = vunpack.c.l.b16 %v1314
    %v1894 = vunpack.c.h.b16 %v1314
    %v1895 = vunpack.c.l.b16 %v1315
    %v1896 = vunpack.c.h.b16 %v1315
    %v1897 = vunpack.c.l.b16 %v1316
    %v1898 = vunpack.c.h.b16 %v1316
    %v1899 = vunpack.c.l.b16 %v1317
    %v1900 = vunpack.c.h.b16 %v1317
    %v1901 = vunpack.c.l.b16 %v1318
    %v1902 = vunpack.c.h.b16 %v1318
    %v1903 = vunpack.c.l.b16 %v1319
    %v1904 = vunpack.c.h.b16 %v1319
    %v1905 = vunpack.c.l.b16 %v1320
    %v1906 = vunpack.c.h.b16 %v1320
    %v1907 = vunpack.c.l.b16 %v1321
    %v1908 = vunpack.c.h.b16 %v1321
    %v1909 = vunpack.c.l.b16 %v1322
    %v1910 = vunpack.c.h.b16 %v1322
    %v1911 = vunpack.c.l.b16 %v1323
    %v1912 = vunpack.c.h.b16 %v1323
    %v1913 = vunpack.c.l.b16 %v1324
    %v1914 = vunpack.c.h.b16 %v1324
    %v1915 = vunpack.c.l.b16 %v1325
    %v1916 = vunpack.c.h.b16 %v1325
    %v1917 = vunpack.c.l.b16 %v1326
    %v1918 = vunpack.c.h.b16 %v1326
    %v1919 = vunpack.c.l.b16 %v1327
    %v1920 = vunpack.c.h.b16 %v1327
    %v1921 = vunpack.c.l.b16 %v1328
    %v1922 = vunpack.c.h.b16 %v1328
    %v1923 = vunpack.c.l.b16 %v1329
    %v1924 = vunpack.c.h.b16 %v1329
    %v1925 = vunpack.c.l.b16 %v1330
    %v1926 = vunpack.c.h.b16 %v1330
    %v1927 = vunpack.c.l.b16 %v1331
    %v1928 = vunpack.c.h.b16 %v1331
    %v1929 = vunpack.c.l.b16 %v1332
    %v1930 = vunpack.c.h.b16 %v1332
    %v1931 = vunpack.c.l.b16 %v1333
    %v1932 = vunpack.c.h.b16 %v1333
    %v1933 = vunpack.c.l.b16 %v1334
    %v1934 = vunpack.c.h.b16 %v1334
    %v1935 = vunpack.c.l.b16 %v1335
    %v1936 = vunpack.c.h.b16 %v1335
    %v1937 = vunpack.c.l.b16 %v1336
    %v1938 = vunpack.c.h.b16 %v1336
    %v1939 = vunpack.c.l.b16 %v1337
    %v1940 = vunpack.c.h.b16 %v1337
    %v1941 = vunpack.c.l.b16 %v1338
    %v1942 = vunpack.c.h.b16 %v1338
    %v1943 = vunpack.c.l.b16 %v1339
    %v1944 = vunpack.c.h.b16 %v1339
    %v1945 = vunpack.c.l.b16 %v1340
    %v1946 = vunpack.c.h.b16 %v1340
    %v1947 = vunpack.c.l.b16 %v1341
    %v1948 = vunpack.c.h.b16 %v1341
    %v1949 = vunpack.c.l.b16 %v1342
    %v1950 = vunpack.c.h.b16 %v1342
    %v1951 = vunpack.c.l.b16 %v1343
    %v1952 = vunpack.c.h.b16 %v1343
    %v1953 = vunpack.c.l.b16 %v1344
    %v1954 = vunpack.c.h.b16 %v1344
    %v1955 = vunpack.c.l.b16 %v1345
    %v1956 = vunpack.c.h.b16 %v1345
    %v1957 = vunpack.c.l.b16 %v1346
    %v1958 = vunpack.c.h.b16 %v1346
    %v1959 = vunpack.c.l.b16 %v1347
    %v1960 = vunpack.c.h.b16 %v1347
    %v1961 = vunpack.c.l.b16 %v1348
    %v1962 = vunpack.c.h.b16 %v1348
    %v1963 = vunpack.c.l.b16 %v1349
    %v1964 = vunpack.c.h.b16 %v1349
    %v1965 = vunpack.c.l.b16 %v1350
    %v1966 = vunpack.c.h.b16 %v1350
    %v1967 = vunpack.c.l.b16 %v1351
    %v1968 = vunpack.c.h.b16 %v1351
    %v1969 = vunpack.c.l.b16 %v1352
    %v1970 = vunpack.c.h.b16 %v1352
    %v1971 = vunpack.c.l.b16 %v1353
    %v1972 = vunpack.c.h.b16 %v1353
    %v1973 = vunpack.c.l.b16 %v1354
    %v1974 = vunpack.c.h.b16 %v1354
    %v1975 = vunpack.c.l.b16 %v1355
    %v1976 = vunpack.c.h.b16 %v1355
    %v1977 = vunpack.c.l.b16 %v1356
    %v1978 = vunpack.c.h.b16 %v1356
    %v1979 = vunpack.c.l.b16 %v1357
    %v1980 = vunpack.c.h.b16 %v1357
    %v1981 = vunpack.c.l.b16 %v1358
    %v1982 = vunpack.c.h.b16 %v1358
    %v1983 = vunpack.c.l.b16 %v1359
    %v1984 = vunpack.c.h.b16 %v1359
    %v1985 = vunpack.c.l.b16 %v1360
    %v1986 = vunpack.c.h.b16 %v1360
    %v1987 = vunpack.c.l.b16 %v1361
    %v1988 = vunpack.c.h.b16 %v1361
    %v1989 = vunpack.c.l.b16 %v1362
    %v1990 = vunpack.c.h.b16 %v1362
    %v1991 = vunpack.c.l.b16 %v1363
    %v1992 = vunpack.c.h.b16 %v1363
    %v1993 = vunpack.c.l.b16 %v1364
    %v1994 = vunpack.c.h.b16 %v1364
    %v1995 = vunpack.c.l.b16 %v1365
    %v1996 = vunpack.c.h.b16 %v1365
    %v1997 = vunpack.c.l.b16 %v1366
    %v1998 = vunpack.c.h.b16 %v1366
    %v1999 = vunpack.c.l.b16 %v1367
    %v2000 = vunpack.c.h.b16 %v1367
    %v2001 = vunpack.c.l.b16 %v1368
    %v2002 = vunpack.c.h.b16 %v1368
    %v2003 = vunpack.c.l.b16 %v1369
    %v2004 = vunpack.c.h.b16 %v1369
    %v2005 = vunpack.c.l.b16 %v1370
    %v2006 = vunpack.c.h.b16 %v1370
    %v2007 = vunpack.c.l.b16 %v1371
    %v2008 = vunpack.c.h.b16 %v1371
    %v2009 = vunpack.c.l.b16 %v1372
    %v2010 = vunpack.c.h.b16 %v1372
    %v2011 = vunpack.c.l.b16 %v1373
    %v2012 = vunpack.c.h.b16 %v1373
    %v2013 = vunpack.c.l.b16 %v1374
    %v2014 = vunpack.c.h.b16 %v1374
    %v2015 = vunpack.c.l.b16 %v1375
    %v2016 = vunpack.c.h.b16 %v1375
    %v2017 = vunpack.c.l.b16 %v1376
    %v2018 = vunpack.c.h.b16 %v1376
    %v2019 = vunpack.c.l.b16 %v1377
    %v2020 = vunpack.c.h.b16 %v1377
    %v2021 = vunpack.c.l.b16 %v1378
    %v2022 = vunpack.c.h.b16 %v1378
    %v2023 = vunpack.c.l.b16 %v1379
    %v2024 = vunpack.c.h.b16 %v1379
    %v2025 = vunpack.c.l.b16 %v1380
    %v2026 = vunpack.c.h.b16 %v1380
    %v2027 = vunpack.c.l.b16 %v1381
    %v2028 = vunpack.c.h.b16 %v1381
    %v2029 = vunpack.c.l.b16 %v1382
    %v2030 = vunpack.c.h.b16 %v1382
    %v2031 = vunpack.c.l.b16 %v1383
    %v2032 = vunpack.c.h.b16 %v1383
    %v2033 = vunpack.c.l.b16 %v1384
    %v2034 = vunpack.c.h.b16 %v1384
    %v2035 = vunpack.c.l.b16 %v1385
    %v2036 = vunpack.c.h.b16 %v1385
    %v2037 = vunpack.c.l.b16 %v1386
    %v2038 = vunpack.c.h.b16 %v1386
    %v2039 = vunpack.c.l.b16 %v1387
    %v2040 = vunpack.c.h.b16 %v1387
    %v2041 = vunpack.c.l.b16 %v1388
    %v2042 = vunpack.c.h.b16 %v1388
    %v2043 = vunpack.c.l.b16 %v1389
    %v2044 = vunpack.c.h.b16 %v1389
    %v2045 = vunpack.c.l.b16 %v1390
    %v2046 = vunpack.c.h.b16 %v1390
    %v2047 = vunpack.c.l.b16 %v1391
    %v2048 = vunpack.c.h.b16 %v1391
    %v2049 = vunpack.c.l.b16 %v1392
    %v2050 = vunpack.c.h.b16 %v1392
    %v2051 = vunpack.c.l.b16 %v1393
    %v2052 = vunpack.c.h.b16 %v1393
    %v2053 = vunpack.c.l.b16 %v1394
    %v2054 = vunpack.c.h.b16 %v1394
    %v2055 = vunpack.c.l.b16 %v1395
    %v2056 = vunpack.c.h.b16 %v1395
    %v2057 = vunpack.c.l.b16 %v1396
    %v2058 = vunpack.c.h.b16 %v1396
    %v2059 = vunpack.c.l.b16 %v1397
    %v2060 = vunpack.c.h.b16 %v1397
    %v2061 = vunpack.c.l.b16 %v1398
    %v2062 = vunpack.c.h.b16 %v1398
    %v2063 = vunpack.c.l.b16 %v1399
    %v2064 = vunpack.c.h.b16 %v1399
    %v2065 = vunpack.c.l.b16 %v1400
    %v2066 = vunpack.c.h.b16 %v1400
    %v2067 = vunpack.c.l.b16 %v1401
    %v2068 = vunpack.c.h.b16 %v1401
    %v2069 = vunpack.c.l.b16 %v1402
    %v2070 = vunpack.c.h.b16 %v1402
    %v2071 = vunpack.c.l.b16 %v1403
    %v2072 = vunpack.c.h.b16 %v1403
    %v2073 = vunpack.c.l.b16 %v1404
    %v2074 = vunpack.c.h.b16 %v1404
    %v2075 = vunpack.c.l.b16 %v1405
    %v2076 = vunpack.c.h.b16 %v1405
    %v2077 = vunpack.c.l.b16 %v1406
    %v2078 = vunpack.c.h.b16 %v1406
    %v2079 = vunpack.c.l.b16 %v1407
    %v2080 = vunpack.c.h.b16 %v1407
    %v2081 = vunpack.c.l.b16 %v1408
    %v2082 = vunpack.c.h.b16 %v1408
    %v2083 = vunpack.c.l.b16 %v1409
    %v2084 = vunpack.c.h.b16 %v1409
    %v2085 = vunpack.c.l.b16 %v1410
    %v2086 = vunpack.c.h.b16 %v1410
    %v2087 = vunpack.c.l.b16 %v1411
    %v2088 = vunpack.c.h.b16 %v1411
    %v2089 = vunpack.c.l.b16 %v1412
    %v2090 = vunpack.c.h.b16 %v1412
    %v2091 = vunpack.c.l.b16 %v1413
    %v2092 = vunpack.c.h.b16 %v1413
    %v2093 = vunpack.c.l.b16 %v1414
    %v2094 = vunpack.c.h.b16 %v1414
    %v2095 = vunpack.c.l.b16 %v1415
    %v2096 = vunpack.c.h.b16 %v1415
    %v2097 = vunpack.c.l.b16 %v1416
    %v2098 = vunpack.c.h.b16 %v1416
    %v2099 = vunpack.c.l.b16 %v1417
    %v2100 = vunpack.c.h.b16 %v1417
    %v2101 = vunpack.c.l.b16 %v1418
    %v2102 = vunpack.c.h.b16 %v1418
    %v2103 = vunpack.c.l.b16 %v1419
    %v2104 = vunpack.c.h.b16 %v1419
    %v2105 = vunpack.c.l.b16 %v1420
    %v2106 = vunpack.c.h.b16 %v1420
    %v2107 = vunpack.c.l.b16 %v1421
    %v2108 = vunpack.c.h.b16 %v1421
    %v2109 = vunpack.c.l.b16 %v1422
    %v2110 = vunpack.c.h.b16 %v1422
    %v2111 = vunpack.c.l.b16 %v1423
    %v2112 = vunpack.c.h.b16 %v1423
    %v2113 = vunpack.c.l.b16 %v1424
    %v2114 = vunpack.c.h.b16 %v1424
    %v2115 = vunpack.c.l.b16 %v1425
    %v2116 = vunpack.c.h.b16 %v1425
    %v2117 = vunpack.c.l.b16 %v1426
    %v2118 = vunpack.c.h.b16 %v1426
    %v2119 = vunpack.c.l.b16 %v1427
    %v2120 = vunpack.c.h.b16 %v1427
    %v2121 = vunpack.c.l.b16 %v1428
    %v2122 = vunpack.c.h.b16 %v1428
    %v2123 = vunpack.c.l.b16 %v1429
    %v2124 = vunpack.c.h.b16 %v1429
    %v2125 = vunpack.c.l.b16 %v1430
    %v2126 = vunpack.c.h.b16 %v1430
    %v2127 = vunpack.c.l.b16 %v1431
    %v2128 = vunpack.c.h.b16 %v1431
    %v2129 = vunpack.c.l.b16 %v1432
    %v2130 = vunpack.c.h.b16 %v1432
    %v2131 = vunpack.c.l.b16 %v1433
    %v2132 = vunpack.c.h.b16 %v1433
    %v2133 = vunpack.c.l.b16 %v1434
    %v2134 = vunpack.c.h.b16 %v1434
    %v2135 = vunpack.c.l.b16 %v1435
    %v2136 = vunpack.c.h.b16 %v1435
    %v2137 = vunpack.c.l.b16 %v1436
    %v2138 = vunpack.c.h.b16 %v1436
    %v2139 = vunpack.c.l.b16 %v1437
    %v2140 = vunpack.c.h.b16 %v1437
    %v2141 = vunpack.c.l.b16 %v1438
    %v2142 = vunpack.c.h.b16 %v1438
    %v2143 = vunpack.c.l.b16 %v1439
    %v2144 = vunpack.c.h.b16 %v1439
    %v2145 = vunpack.c.l.b16 %v1440
    %v2146 = vunpack.c.h.b16 %v1440
    %v2147 = vunpack.c.l.b16 %v1441
    %v2148 = vunpack.c.h.b16 %v1441
    %v2149 = vunpack.c.l.b16 %v1442
    %v2150 = vunpack.c.h.b16 %v1442
    %v2151 = vunpack.c.l.b16 %v1443
    %v2152 = vunpack.c.h.b16 %v1443
    %v2153 = vunpack.c.l.b16 %v1444
    %v2154 = vunpack.c.h.b16 %v1444
    %v2155 = vunpack.c.l.b16 %v1445
    %v2156 = vunpack.c.h.b16 %v1445
    %v2157 = vunpack.c.l.b16 %v1446
    %v2158 = vunpack.c.h.b16 %v1446
    %v2159 = vunpack.c.l.b16 %v1447
    %v2160 = vunpack.c.h.b16 %v1447
    %v2161 = vunpack.c.l.b16 %v1448
    %v2162 = vunpack.c.h.b16 %v1448
    %v2163 = vunpack.c.l.b16 %v1449
    %v2164 = vunpack.c.h.b16 %v1449
    %v2165 = vunpack.c.l.b16 %v1450
    %v2166 = vunpack.c.h.b16 %v1450
    %v2167 = vunpack.c.l.b16 %v1451
    %v2168 = vunpack.c.h.b16 %v1451
    %v2169 = vunpack.c.l.b16 %v1452
    %v2170 = vunpack.c.h.b16 %v1452
    %v2171 = vunpack.c.l.b16 %v1453
    %v2172 = vunpack.c.h.b16 %v1453
    %v2173 = vunpack.c.l.b16 %v1454
    %v2174 = vunpack.c.h.b16 %v1454
    %v2175 = vunpack.c.l.b16 %v1455
    %v2176 = vunpack.c.h.b16 %v1455
    %v2177 = vunpack.c.l.b16 %v1456
    %v2178 = vunpack.c.h.b16 %v1456
    %v2179 = vunpack.c.l.b16 %v1457
    %v2180 = vunpack.c.h.b16 %v1457
    %v2181 = vunpack.c.l.b16 %v1458
    %v2182 = vunpack.c.h.b16 %v1458
    %v2183 = vunpack.c.l.b16 %v1459
    %v2184 = vunpack.c.h.b16 %v1459
    %v2185 = vunpack.c.l.b16 %v1460
    %v2186 = vunpack.c.h.b16 %v1460
    %v2187 = vunpack.c.l.b16 %v1461
    %v2188 = vunpack.c.h.b16 %v1461
    %v2189 = vunpack.c.l.b16 %v1462
    %v2190 = vunpack.c.h.b16 %v1462
    %v2191 = vunpack.c.l.b16 %v1463
    %v2192 = vunpack.c.h.b16 %v1463
    %v2193 = vunpack.c.l.b16 %v1464
    %v2194 = vunpack.c.h.b16 %v1464
    %v2195 = vunpack.c.l.b16 %v1465
    %v2196 = vunpack.c.h.b16 %v1465
    %v2197 = vunpack.c.l.b16 %v1466
    %v2198 = vunpack.c.h.b16 %v1466
    %v2199 = vunpack.c.l.b16 %v1467
    %v2200 = vunpack.c.h.b16 %v1467
    %v2201 = vunpack.c.l.b16 %v1468
    %v2202 = vunpack.c.h.b16 %v1468
    %v2203 = vunpack.c.l.b16 %v1469
    %v2204 = vunpack.c.h.b16 %v1469
    %v2205 = vunpack.c.l.b16 %v1470
    %v2206 = vunpack.c.h.b16 %v1470
    %v2207 = vunpack.c.l.b16 %v1471
    %v2208 = vunpack.c.h.b16 %v1471
    %v2209 = vunpack.c.l.b16 %v1472
    %v2210 = vunpack.c.h.b16 %v1472
    %v2211 = vunpack.c.l.b16 %v1473
    %v2212 = vunpack.c.h.b16 %v1473
    %v2213 = vunpack.c.l.b16 %v1474
    %v2214 = vunpack.c.h.b16 %v1474
    %v2215 = vunpack.c.l.b16 %v1475
    %v2216 = vunpack.c.h.b16 %v1475
    %v2217 = vunpack.c.l.b16 %v1476
    %v2218 = vunpack.c.h.b16 %v1476
    %v2219 = vunpack.c.l.b16 %v1477
    %v2220 = vunpack.c.h.b16 %v1477
    %v2221 = vunpack.c.l.b16 %v1478
    %v2222 = vunpack.c.h.b16 %v1478
    %v2223 = vunpack.c.l.b16 %v1479
    %v2224 = vunpack.c.h.b16 %v1479
    %v2225 = vunpack.c.l.b16 %v1480
    %v2226 = vunpack.c.h.b16 %v1480
    %v2227 = vunpack.c.l.b16 %v1481
    %v2228 = vunpack.c.h.b16 %v1481
    %v2229 = vunpack.c.l.b16 %v1482
    %v2230 = vunpack.c.h.b16 %v1482
    %v2231 = vunpack.c.l.b16 %v1483
    %v2232 = vunpack.c.h.b16 %v1483
    %v2233 = vunpack.c.l.b16 %v1484
    %v2234 = vunpack.c.h.b16 %v1484
    %v2235 = vunpack.c.l.b16 %v1485
    %v2236 = vunpack.c.h.b16 %v1485
    %v2237 = vunpack.c.l.b16 %v1486
    %v2238 = vunpack.c.h.b16 %v1486
    %v2239 = vunpack.c.l.b16 %v1487
    %v2240 = vunpack.c.h.b16 %v1487
    %v2241 = vunpack.c.l.b16 %v1488
    %v2242 = vunpack.c.h.b16 %v1488
    %v2243 = vunpack.c.l.b16 %v1489
    %v2244 = vunpack.c.h.b16 %v1489
    %v2245 = vunpack.c.l.b16 %v1490
    %v2246 = vunpack.c.h.b16 %v1490
    %v2247 = vunpack.c.l.b16 %v1491
    %v2248 = vunpack.c.h.b16 %v1491
    %v2249 = vunpack.c.l.b16 %v1492
    %v2250 = vunpack.c.h.b16 %v1492
    %v2251 = vunpack.c.l.b16 %v1493
    %v2252 = vunpack.c.h.b16 %v1493
    %v2253 = vunpack.c.l.b16 %v1494
    %v2254 = vunpack.c.h.b16 %v1494
    %v2255 = vunpack.c.l.b16 %v1495
    %v2256 = vunpack.c.h.b16 %v1495
    %v2257 = vunpack.c.l.b16 %v1496
    %v2258 = vunpack.c.h.b16 %v1496
    %v2259 = vunpack.c.l.b16 %v1497
    %v2260 = vunpack.c.h.b16 %v1497
    %v2261 = vunpack.c.l.b16 %v1498
    %v2262 = vunpack.c.h.b16 %v1498
    %v2263 = vunpack.c.l.b16 %v1499
    %v2264 = vunpack.c.h.b16 %v1499
    %v2265 = vunpack.c.l.b16 %v1500
    %v2266 = vunpack.c.h.b16 %v1500
    %v2267 = vunpack.c.l.b16 %v1501
    %v2268 = vunpack.c.h.b16 %v1501
    %v2269 = vunpack.c.l.b16 %v1502
    %v2270 = vunpack.c.h.b16 %v1502
    %v2271 = vunpack.c.l.b16 %v1503
    %v2272 = vunpack.c.h.b16 %v1503
    %v2273 = vunpack.c.l.b16 %v1504
    %v2274 = vunpack.c.h.b16 %v1504
    %v2275 = vunpack.c.l.b16 %v1505
    %v2276 = vunpack.c.h.b16 %v1505
    %v2277 = vunpack.c.l.b16 %v1506
    %v2278 = vunpack.c.h.b16 %v1506
    %v2279 = vunpack.c.l.b16 %v1507
    %v2280 = vunpack.c.h.b16 %v1507
    %v2281 = vunpack.c.l.b16 %v1508
    %v2282 = vunpack.c.h.b16 %v1508
    %v2283 = vunpack.c.l.b16 %v1509
    %v2284 = vunpack.c.h.b16 %v1509
    %v2285 = vunpack.c.l.b16 %v1510
    %v2286 = vunpack.c.h.b16 %v1510
    %v2287 = vunpack.c.l.b16 %v1511
    %v2288 = vunpack.c.h.b16 %v1511
    %v2289 = vunpack.c.l.b16 %v1512
    %v2290 = vunpack.c.h.b16 %v1512
    %v2291 = vunpack.c.l.b16 %v1513
    %v2292 = vunpack.c.h.b16 %v1513
    %v2293 = vunpack.c.l.b16 %v1514
    %v2294 = vunpack.c.h.b16 %v1514
    %v2295 = vpack.c.b16 %v1785, %v1783
    %v2296 = vpack.c.b16 %v1786, %v1784
    %v2297 = vpack.c.b16 %v1789, %v1787
    %v2298 = vpack.c.b16 %v1790, %v1788
    %v2299 = vpack.c.b16 %v1793, %v1791
    %v2300 = vpack.c.b16 %v1794, %v1792
    %v2301 = vpack.c.b16 %v1797, %v1795
    %v2302 = vpack.c.b16 %v1798, %v1796
    %v2303 = vpack.c.b16 %v1801, %v1799
    %v2304 = vpack.c.b16 %v1802, %v1800
    %v2305 = vpack.c.b16 %v1805, %v1803
    %v2306 = vpack.c.b16 %v1806, %v1804
    %v2307 = vpack.c.b16 %v1809, %v1807
    %v2308 = vpack.c.b16 %v1810, %v1808
    %v2309 = vpack.c.b16 %v1813, %v1811
    %v2310 = vpack.c.b16 %v1814, %v1812
    %v2311 = vpack.c.b16 %v1817, %v1815
    %v2312 = vpack.c.b16 %v1818, %v1816
    %v2313 = vpack.c.b16 %v1821, %v1819
    %v2314 = vpack.c.b16 %v1822, %v1820
    %v2315 = vpack.c.b16 %v1825, %v1823
    %v2316 = vpack.c.b16 %v1826, %v1824
    %v2317 = vpack.c.b16 %v1829, %v1827
    %v2318 = vpack.c.b16 %v1830, %v1828
    %v2319 = vpack.c.b16 %v1833, %v1831
    %v2320 = vpack.c.b16 %v1834, %v1832
    %v2321 = vpack.c.b16 %v1837, %v1835
    %v2322 = vpack.c.b16 %v1838, %v1836
    %v2323 = vpack.c.b16 %v1841, %v1839
    %v2324 = vpack.c.b16 %v1842, %v1840
    %v2325 = vpack.c.b16 %v1845, %v1843
    %v2326 = vpack.c.b16 %v1846, %v1844
    %v2327 = vpack.c.b16 %v1849, %v1847
    %v2328 = vpack.c.b16 %v1850, %v1848
    %v2329 = vpack.c.b16 %v1853, %v1851
    %v2330 = vpack.c.b16 %v1854, %v1852
    %v2331 = vpack.c.b16 %v1857, %v1855
    %v2332 = vpack.c.b16 %v1858, %v1856
    %v2333 = vpack.c.b16 %v1861, %v1859
    %v2334 = vpack.c.b16 %v1862, %v1860
    %v2335 = vpack.c.b16 %v1865, %v1863
    %v2336 = vpack.c.b16 %v1866, %v1864
    %v2337 = vpack.c.b16 %v1869, %v1867
    %v2338 = vpack.c.b16 %v1870, %v1868
    %v2339 = vpack.c.b16 %v1873, %v1871
    %v2340 = vpack.c.b16 %v1874, %v1872
    %v2341 = vpack.c.b16 %v1877, %v1875
    %v2342 = vpack.c.b16 %v1878, %v1876
    %v2343 = vpack.c.b16 %v1881, %v1879
    %v2344 = vpack.c.b16 %v1882, %v1880
    %v2345 = vpack.c.b16 %v1885, %v1883
    %v2346 = vpack.c.b16 %v1886, %v1884
    %v2347 = vpack.c.b16 %v1889, %v1887
    %v2348 = vpack.c.b16 %v1890, %v1888
    %v2349 = vpack.c.b16 %v1893, %v1891
    %v2350 = vpack.c.b16 %v1894, %v1892
    %v2351 = vpack.c.b16 %v1897, %v1895
    %v2352 = vpack.c.b16 %v1898, %v1896
    %v2353 = vpack.c.b16 %v1901, %v1899
    %v2354 = vpack.c.b16 %v1902, %v1900
    %v2355 = vpack.c.b16 %v1905, %v1903
    %v2356 = vpack.c.b16 %v1906, %v1904
    %v2357 = vpack.c.b16 %v1909, %v1907
    %v2358 = vpack.c.b16 %v1910, %v1908
    %v2359 = vpack.c.b16 %v1913, %v1911
    %v2360 = vpack.c.b16 %v1914, %v1912
    %v2361 = vpack.c.b16 %v1917, %v1915
    %v2362 = vpack.c.b16 %v1918, %v1916
    %v2363 = vpack.c.b16 %v1921, %v1919
    %v2364 = vpack.c.b16 %v1922, %v1920
    %v2365 = vpack.c.b16 %v1925, %v1923
    %v2366 = vpack.c.b16 %v1926, %v1924
    %v2367 = vpack.c.b16 %v1929, %v1927
    %v2368 = vpack.c.b16 %v1930, %v1928
    %v2369 = vpack.c.b16 %v1933, %v1931
    %v2370 = vpack.c.b16 %v1934, %v1932
    %v2371 = vpack.c.b16 %v1937, %v1935
    %v2372 = vpack.c.b16 %v1938, %v1936
    %v2373 = vpack.c.b16 %v1941, %v1939
    %v2374 = vpack.c.b16 %v1942, %v1940
    %v2375 = vpack.c.b16 %v1945, %v1943
    %v2376 = vpack.c.b16 %v1946, %v1944
    %v2377 = vpack.c.b16 %v1949, %v1947
    %v2378 = vpack.c.b16 %v1950, %v1948
    %v2379 = vpack.c.b16 %v1953, %v1951
    %v2380 = vpack.c.b16 %v1954, %v1952
    %v2381 = vpack.c.b16 %v1957, %v1955
    %v2382 = vpack.c.b16 %v1958, %v1956
    %v2383 = vpack.c.b16 %v1961, %v1959
    %v2384 = vpack.c.b16 %v1962, %v1960
    %v2385 = vpack.c.b16 %v1965, %v1963
    %v2386 = vpack.c.b16 %v1966, %v1964
    %v2387 = vpack.c.b16 %v1969, %v1967
    %v2388 = vpack.c.b16 %v1970, %v1968
    %v2389 = vpack.c.b16 %v1973, %v1971
    %v2390 = vpack.c.b16 %v1974, %v1972
    %v2391 = vpack.c.b16 %v1977, %v1975
    %v2392 = vpack.c.b16 %v1978, %v1976
    %v2393 = vpack.c.b16 %v1981, %v1979
    %v2394 = vpack.c.b16 %v1982, %v1980
    %v2395 = vpack.c.b16 %v1985, %v1983
    %v2396 = vpack.c.b16 %v1986, %v1984
    %v2397 = vpack.c.b16 %v1989, %v1987
    %v2398 = vpack.c.b16 %v1990, %v1988
    %v2399 = vpack.c.b16 %v1993, %v1991
    %v2400 = vpack.c.b16 %v1994, %v1992
    %v2401 = vpack.c.b16 %v1997, %v1995
    %v2402 = vpack.c.b16 %v1998, %v1996
    %v2403 = vpack.c.b16 %v2001, %v1999
    %v2404 = vpack.c.b16 %v2002, %v2000
    %v2405 = vpack.c.b16 %v2005, %v2003
    %v2406 = vpack.c.b16 %v2006, %v2004
    %v2407 = vpack.c.b16 %v2009, %v2007
    %v2408 = vpack.c.b16 %v2010, %v2008
    %v2409 = vpack.c.b16 %v2013, %v2011
    %v2410 = vpack.c.b16 %v2014, %v2012
    %v2411 = vpack.c.b16 %v2017, %v2015
    %v2412 = vpack.c.b16 %v2018, %v2016
    %v2413 = vpack.c.b16 %v2021, %v2019
    %v2414 = vpack.c.b16 %v2022, %v2020
    %v2415 = vpack.c.b16 %v2025, %v2023
    %v2416 = vpack.c.b16 %v2026, %v2024
    %v2417 = vpack.c.b16 %v2029, %v2027
    %v2418 = vpack.c.b16 %v2030, %v2028
    %v2419 = vpack.c.b16 %v2033, %v2031
    %v2420 = vpack.c.b16 %v2034, %v2032
    %v2421 = vpack.c.b16 %v2037, %v2035
    %v2422 = vpack.c.b16 %v2038, %v2036
    %v2423 = vpack.c.b16 %v2041, %v2039
    %v2424 = vpack.c.b16 %v2042, %v2040
    %v2425 = vpack.c.b16 %v2045, %v2043
    %v2426 = vpack.c.b16 %v2046, %v2044
    %v2427 = vpack.c.b16 %v2049, %v2047
    %v2428 = vpack.c.b16 %v2050, %v2048
    %v2429 = vpack.c.b16 %v2053, %v2051
    %v2430 = vpack.c.b16 %v2054, %v2052
    %v2431 = vpack.c.b16 %v2057, %v2055
    %v2432 = vpack.c.b16 %v2058, %v2056
    %v2433 = vpack.c.b16 %v2061, %v2059
    %v2434 = vpack.c.b16 %v2062, %v2060
    %v2435 = vpack.c.b16 %v2065, %v2063
    %v2436 = vpack.c.b16 %v2066, %v2064
    %v2437 = vpack.c.b16 %v2069, %v2067
    %v2438 = vpack.c.b16 %v2070, %v2068
    %v2439 = vpack.c.b16 %v2073, %v2071
    %v2440 = vpack.c.b16 %v2074, %v2072
    %v2441 = vpack.c.b16 %v2077, %v2075
    %v2442 = vpack.c.b16 %v2078, %v2076
    %v2443 = vpack.c.b16 %v2081, %v2079
    %v2444 = vpack.c.b16 %v2082, %v2080
    %v2445 = vpack.c.b16 %v2085, %v2083
    %v2446 = vpack.c.b16 %v2086, %v2084
    %v2447 = vpack.c.b16 %v2089, %v2087
    %v2448 = vpack.c.b16 %v2090, %v2088
    %v2449 = vpack.c.b16 %v2093, %v2091
    %v2450 = vpack.c.b16 %v2094, %v2092
    %v2451 = vpack.c.b16 %v2097, %v2095
    %v2452 = vpack.c.b16 %v2098, %v2096
    %v2453 = vpack.c.b16 %v2101, %v2099
    %v2454 = vpack.c.b16 %v2102, %v2100
    %v2455 = vpack.c.b16 %v2105, %v2103
    %v2456 = vpack.c.b16 %v2106, %v2104
    %v2457 = vpack.c.b16 %v2109, %v2107
    %v2458 = vpack.c.b16 %v2110, %v2108
    %v2459 = vpack.c.b16 %v2113, %v2111
    %v2460 = vpack.c.b16 %v2114, %v2112
    %v2461 = vpack.c.b16 %v2117, %v2115
    %v2462 = vpack.c.b16 %v2118, %v2116
    %v2463 = vpack.c.b16 %v2121, %v2119
    %v2464 = vpack.c.b16 %v2122, %v2120
    %v2465 = vpack.c.b16 %v2125, %v2123
    %v2466 = vpack.c.b16 %v2126, %v2124
    %v2467 = vpack.c.b16 %v2129, %v2127
    %v2468 = vpack.c.b16 %v2130, %v2128
    %v2469 = vpack.c.b16 %v2133, %v2131
    %v2470 = vpack.c.b16 %v2134, %v2132
    %v2471 = vpack.c.b16 %v2137, %v2135
    %v2472 = vpack.c.b16 %v2138, %v2136
    %v2473 = vpack.c.b16 %v2141, %v2139
    %v2474 = vpack.c.b16 %v2142, %v2140
    %v2475 = vpack.c.b16 %v2145, %v2143
    %v2476 = vpack.c.b16 %v2146, %v2144
    %v2477 = vpack.c.b16 %v2149, %v2147
    %v2478 = vpack.c.b16 %v2150, %v2148
    %v2479 = vpack.c.b16 %v2153, %v2151
    %v2480 = vpack.c.b16 %v2154, %v2152
    %v2481 = vpack.c.b16 %v2157, %v2155
    %v2482 = vpack.c.b16 %v2158, %v2156
    %v2483 = vpack.c.b16 %v2161, %v2159
    %v2484 = vpack.c.b16 %v2162, %v2160
    %v2485 = vpack.c.b16 %v2165, %v2163
    %v2486 = vpack.c.b16 %v2166, %v2164
    %v2487 = vpack.c.b16 %v2169, %v2167
    %v2488 = vpack.c.b16 %v2170, %v2168
    %v2489 = vpack.c.b16 %v2173, %v2171
    %v2490 = vpack.c.b16 %v2174, %v2172
    %v2491 = vpack.c.b16 %v2177, %v2175
    %v2492 = vpack.c.b16 %v2178, %v2176
    %v2493 = vpack.c.b16 %v2181, %v2179
    %v2494 = vpack.c.b16 %v2182, %v2180
    %v2495 = vpack.c.b16 %v2185, %v2183
    %v2496 = vpack.c.b16 %v2186, %v2184
    %v2497 = vpack.c.b16 %v2189, %v2187
    %v2498 = vpack.c.b16 %v2190, %v2188
    %v2499 = vpack.c.b16 %v2193, %v2191
    %v2500 = vpack.c.b16 %v2194, %v2192
    %v2501 = vpack.c.b16 %v2197, %v2195
    %v2502 = vpack.c.b16 %v2198, %v2196
    %v2503 = vpack.c.b16 %v2201, %v2199
    %v2504 = vpack.c.b16 %v2202, %v2200
    %v2505 = vpack.c.b16 %v2205, %v2203
    %v2506 = vpack.c.b16 %v2206, %v2204
    %v2507 = vpack.c.b16 %v2209, %v2207
    %v2508 = vpack.c.b16 %v2210, %v2208
    %v2509 = vpack.c.b16 %v2213, %v2211
    %v2510 = vpack.c.b16 %v2214, %v2212
    %v2511 = vpack.c.b16 %v2217, %v2215
    %v2512 = vpack.c.b16 %v2218, %v2216
    %v2513 = vpack.c.b16 %v2221, %v2219
    %v2514 = vpack.c.b16 %v2222, %v2220
    %v2515 = vpack.c.b16 %v2225, %v2223
    %v2516 = vpack.c.b16 %v2226, %v2224
    %v2517 = vpack.c.b16 %v2229, %v2227
    %v2518 = vpack.c.b16 %v2230, %v2228
    %v2519 = vpack.c.b16 %v2233, %v2231
    %v2520 = vpack.c.b16 %v2234, %v2232
    %v2521 = vpack.c.b16 %v2237, %v2235
    %v2522 = vpack.c.b16 %v2238, %v2236
    %v2523 = vpack.c.b16 %v2241, %v2239
    %v2524 = vpack.c.b16 %v2242, %v2240
    %v2525 = vpack.c.b16 %v2245, %v2243
    %v2526 = vpack.c.b16 %v2246, %v2244
    %v2527 = vpack.c.b16 %v2249, %v2247
    %v2528 = vpack.c.b16 %v2250, %v2248
    %v2529 = vpack.c.b16 %v2253, %v2251
    %v2530 = vpack.c.b16 %v2254, %v2252
    %v2531 = vpack.c.b16 %v2257, %v2255
    %v2532 = vpack.c.b16 %v2258, %v2256
    %v2533 = vpack.c.b16 %v2261, %v2259
    %v2534 = vpack.c.b16 %v2262, %v2260
    %v2535 = vpack.c.b16 %v2265, %v2263
    %v2536 = vpack.c.b16 %v2266, %v2264
    %v2537 = vpack.c.b16 %v2269, %v2267
    %v2538 = vpack.c.b16 %v2270, %v2268
    %v2539 = vpack.c.b16 %v2273, %v2271
    %v2540 = vpack.c.b16 %v2274, %v2272
    %v2541 = vpack.c.b16 %v2277, %v2275
    %v2542 = vpack.c.b16 %v2278, %v2276
    %v2543 = vpack.c.b16 %v2281, %v2279
    %v2544 = vpack.c.b16 %v2282, %v2280
    %v2545 = vpack.c.b16 %v2285, %v2283
    %v2546 = vpack.c.b16 %v2286, %v2284
    %v2547 = vpack.c.b16 %v2289, %v2287
    %v2548 = vpack.c.b16 %v2290, %v2288
    %v2549 = vpack.c.b16 %v2293, %v2291
    %v2550 = vpack.c.b16 %v2294, %v2292
    %2807 = vmatprep.subr.bf16.mxu0 %v2296
    %2808 = vmatpush1.bf16.msra.mxu0 %v2295
    %2809 = vmatprep.subr.bf16.mxu0 %v2298
    %2810 = vmatpush1.bf16.msra.mxu0 %v2297
    %2811 = vmatprep.subr.bf16.mxu0 %v2300
    %2812 = vmatpush1.bf16.msra.mxu0 %v2299
    %2813 = vmatprep.subr.bf16.mxu0 %v2302
    %2814 = vmatpush1.bf16.msra.mxu0 %v2301
    %2815 = vmatprep.subr.bf16.mxu0 %v2304
    %2816 = vmatpush1.bf16.msra.mxu0 %v2303
    %2817 = vmatprep.subr.bf16.mxu0 %v2306
    %2818 = vmatpush1.bf16.msra.mxu0 %v2305
    %2819 = vmatprep.subr.bf16.mxu0 %v2308
    %2820 = vmatpush1.bf16.msra.mxu0 %v2307
    %2821 = vmatprep.subr.bf16.mxu0 %v2310
    %2822 = vmatpush1.bf16.msra.mxu0 %v2309
    %2823 = vmatprep.subr.bf16.mxu0 %v2312
    %2824 = vmatpush1.bf16.msra.mxu0 %v2311
    %2825 = vmatprep.subr.bf16.mxu0 %v2314
    %2826 = vmatpush1.bf16.msra.mxu0 %v2313
    %2827 = vmatprep.subr.bf16.mxu0 %v2316
    %2828 = vmatpush1.bf16.msra.mxu0 %v2315
    %2829 = vmatprep.subr.bf16.mxu0 %v2318
    %2830 = vmatpush1.bf16.msra.mxu0 %v2317
    %2831 = vmatprep.subr.bf16.mxu0 %v2320
    %2832 = vmatpush1.bf16.msra.mxu0 %v2319
    %2833 = vmatprep.subr.bf16.mxu0 %v2322
    %2834 = vmatpush1.bf16.msra.mxu0 %v2321
    %2835 = vmatprep.subr.bf16.mxu0 %v2324
    %2836 = vmatpush1.bf16.msra.mxu0 %v2323
    %2837 = vmatprep.subr.bf16.mxu0 %v2326
    %2838 = vmatpush1.bf16.msra.mxu0 %v2325
    %2839 = vmatprep.mubr.bf16.mxu0 %v1244
    %2840 = vmatmul.mubr.bf16.gmra.mrb[0].mxu0 %v1243
    %v2841 = vpop.f32.mrb[0].mxu0
    %v2842 = vadd.f32 %v1520, %v2841
    %v2843 = vpop.f32.mrb[0].mxu0
    %v2844 = vadd.f32 %v1524, %v2843
    %v2845 = vpop.f32.mrb[0].mxu0
    %v2846 = vpop.f32.mrb[0].mxu0
    %2847 = vdwg.mxu0
    %2848 = vmatprep.subr.bf16.mxu0 %v2328
    %2849 = vmatpush1.bf16.msra.mxu0 %v2327
    %2850 = vmatprep.subr.bf16.mxu0 %v2330
    %2851 = vmatpush1.bf16.msra.mxu0 %v2329
    %2852 = vmatprep.subr.bf16.mxu0 %v2332
    %2853 = vmatpush1.bf16.msra.mxu0 %v2331
    %2854 = vmatprep.subr.bf16.mxu0 %v2334
    %2855 = vmatpush1.bf16.msra.mxu0 %v2333
    %2856 = vmatprep.subr.bf16.mxu0 %v2336
    %2857 = vmatpush1.bf16.msra.mxu0 %v2335
    %2858 = vmatprep.subr.bf16.mxu0 %v2338
    %2859 = vmatpush1.bf16.msra.mxu0 %v2337
    %2860 = vmatprep.subr.bf16.mxu0 %v2340
    %2861 = vmatpush1.bf16.msra.mxu0 %v2339
    %2862 = vmatprep.subr.bf16.mxu0 %v2342
    %2863 = vmatpush1.bf16.msra.mxu0 %v2341
    %2864 = vmatprep.subr.bf16.mxu0 %v2344
    %2865 = vmatpush1.bf16.msra.mxu0 %v2343
    %2866 = vmatprep.subr.bf16.mxu0 %v2346
    %2867 = vmatpush1.bf16.msra.mxu0 %v2345
    %2868 = vmatprep.subr.bf16.mxu0 %v2348
    %2869 = vmatpush1.bf16.msra.mxu0 %v2347
    %2870 = vmatprep.subr.bf16.mxu0 %v2350
    %2871 = vmatpush1.bf16.msra.mxu0 %v2349
    %2872 = vmatprep.subr.bf16.mxu0 %v2352
    %2873 = vmatpush1.bf16.msra.mxu0 %v2351
    %2874 = vmatprep.subr.bf16.mxu0 %v2354
    %2875 = vmatpush1.bf16.msra.mxu0 %v2353
    %2876 = vmatprep.subr.bf16.mxu0 %v2356
    %2877 = vmatpush1.bf16.msra.mxu0 %v2355
    %2878 = vmatprep.subr.bf16.mxu0 %v2358
    %2879 = vmatpush1.bf16.msra.mxu0 %v2357
    %2880 = vmatprep.mubr.bf16.mxu0 %v1246
    %2881 = vmatmul.mubr.bf16.gmra.mrb[0].mxu0 %v1245
    %v2882 = vpop.f32.mrb[0].mxu0
    %v2883 = vadd.f32 %v2842, %v2882
    %v2884 = vpop.f32.mrb[0].mxu0
    %v2885 = vadd.f32 %v2844, %v2884
    %v2886 = vpop.f32.mrb[0].mxu0
    %v2887 = vpop.f32.mrb[0].mxu0
    %2888 = vdwg.mxu0
    %2889 = vmatprep.subr.bf16.mxu0 %v2360
    %2890 = vmatpush1.bf16.msra.mxu0 %v2359
    %2891 = vmatprep.subr.bf16.mxu0 %v2362
    %2892 = vmatpush1.bf16.msra.mxu0 %v2361
    %2893 = vmatprep.subr.bf16.mxu0 %v2364
    %2894 = vmatpush1.bf16.msra.mxu0 %v2363
    %2895 = vmatprep.subr.bf16.mxu0 %v2366
    %2896 = vmatpush1.bf16.msra.mxu0 %v2365
    %2897 = vmatprep.subr.bf16.mxu0 %v2368
    %2898 = vmatpush1.bf16.msra.mxu0 %v2367
    %2899 = vmatprep.subr.bf16.mxu0 %v2370
    %2900 = vmatpush1.bf16.msra.mxu0 %v2369
    %2901 = vmatprep.subr.bf16.mxu0 %v2372
    %2902 = vmatpush1.bf16.msra.mxu0 %v2371
    %2903 = vmatprep.subr.bf16.mxu0 %v2374
    %2904 = vmatpush1.bf16.msra.mxu0 %v2373
    %2905 = vmatprep.subr.bf16.mxu0 %v2376
    %2906 = vmatpush1.bf16.msra.mxu0 %v2375
    %2907 = vmatprep.subr.bf16.mxu0 %v2378
    %2908 = vmatpush1.bf16.msra.mxu0 %v2377
    %2909 = vmatprep.subr.bf16.mxu0 %v2380
    %2910 = vmatpush1.bf16.msra.mxu0 %v2379
    %2911 = vmatprep.subr.bf16.mxu0 %v2382
    %2912 = vmatpush1.bf16.msra.mxu0 %v2381
    %2913 = vmatprep.subr.bf16.mxu0 %v2384
    %2914 = vmatpush1.bf16.msra.mxu0 %v2383
    %2915 = vmatprep.subr.bf16.mxu0 %v2386
    %2916 = vmatpush1.bf16.msra.mxu0 %v2385
    %2917 = vmatprep.subr.bf16.mxu0 %v2388
    %2918 = vmatpush1.bf16.msra.mxu0 %v2387
    %2919 = vmatprep.subr.bf16.mxu0 %v2390
    %2920 = vmatpush1.bf16.msra.mxu0 %v2389
    %2921 = vmatprep.mubr.bf16.mxu0 %v1248
    %2922 = vmatmul.mubr.bf16.gmra.mrb[0].mxu0 %v1247
    %v2923 = vpop.f32.mrb[0].mxu0
    %v2924 = vadd.f32 %v2883, %v2923
    %v2925 = vpop.f32.mrb[0].mxu0
    %v2926 = vadd.f32 %v2885, %v2925
    %v2927 = vpop.f32.mrb[0].mxu0
    %v2928 = vpop.f32.mrb[0].mxu0
    %2929 = vdwg.mxu0
    %2930 = vmatprep.subr.bf16.mxu0 %v2392
    %2931 = vmatpush1.bf16.msra.mxu0 %v2391
    %2932 = vmatprep.subr.bf16.mxu0 %v2394
    %2933 = vmatpush1.bf16.msra.mxu0 %v2393
    %2934 = vmatprep.subr.bf16.mxu0 %v2396
    %2935 = vmatpush1.bf16.msra.mxu0 %v2395
    %2936 = vmatprep.subr.bf16.mxu0 %v2398
    %2937 = vmatpush1.bf16.msra.mxu0 %v2397
    %2938 = vmatprep.subr.bf16.mxu0 %v2400
    %2939 = vmatpush1.bf16.msra.mxu0 %v2399
    %2940 = vmatprep.subr.bf16.mxu0 %v2402
    %2941 = vmatpush1.bf16.msra.mxu0 %v2401
    %2942 = vmatprep.subr.bf16.mxu0 %v2404
    %2943 = vmatpush1.bf16.msra.mxu0 %v2403
    %2944 = vmatprep.subr.bf16.mxu0 %v2406
    %2945 = vmatpush1.bf16.msra.mxu0 %v2405
    %2946 = vmatprep.subr.bf16.mxu0 %v2408
    %2947 = vmatpush1.bf16.msra.mxu0 %v2407
    %2948 = vmatprep.subr.bf16.mxu0 %v2410
    %2949 = vmatpush1.bf16.msra.mxu0 %v2409
    %2950 = vmatprep.subr.bf16.mxu0 %v2412
    %2951 = vmatpush1.bf16.msra.mxu0 %v2411
    %2952 = vmatprep.subr.bf16.mxu0 %v2414
    %2953 = vmatpush1.bf16.msra.mxu0 %v2413
    %2954 = vmatprep.subr.bf16.mxu0 %v2416
    %2955 = vmatpush1.bf16.msra.mxu0 %v2415
    %2956 = vmatprep.subr.bf16.mxu0 %v2418
    %2957 = vmatpush1.bf16.msra.mxu0 %v2417
    %2958 = vmatprep.subr.bf16.mxu0 %v2420
    %2959 = vmatpush1.bf16.msra.mxu0 %v2419
    %2960 = vmatprep.subr.bf16.mxu0 %v2422
    %2961 = vmatpush1.bf16.msra.mxu0 %v2421
    %2962 = vmatprep.mubr.bf16.mxu0 %v1250
    %2963 = vmatmul.mubr.bf16.gmra.mrb[0].mxu0 %v1249
    %v2964 = vpop.f32.mrb[0].mxu0
    %v2965 = vadd.f32 %v2924, %v2964
    %v2966 = vpop.f32.mrb[0].mxu0
    %v2967 = vadd.f32 %v2926, %v2966
    %v2968 = vpop.f32.mrb[0].mxu0
    %v2969 = vpop.f32.mrb[0].mxu0
    %2970 = vdwg.mxu0
    %2971 = vmatprep.subr.bf16.mxu0 %v2424
    %2972 = vmatpush1.bf16.msra.mxu0 %v2423
    %2973 = vmatprep.subr.bf16.mxu0 %v2426
    %2974 = vmatpush1.bf16.msra.mxu0 %v2425
    %2975 = vmatprep.subr.bf16.mxu0 %v2428
    %2976 = vmatpush1.bf16.msra.mxu0 %v2427
    %2977 = vmatprep.subr.bf16.mxu0 %v2430
    %2978 = vmatpush1.bf16.msra.mxu0 %v2429
    %2979 = vmatprep.subr.bf16.mxu0 %v2432
    %2980 = vmatpush1.bf16.msra.mxu0 %v2431
    %2981 = vmatprep.subr.bf16.mxu0 %v2434
    %2982 = vmatpush1.bf16.msra.mxu0 %v2433
    %2983 = vmatprep.subr.bf16.mxu0 %v2436
    %2984 = vmatpush1.bf16.msra.mxu0 %v2435
    %2985 = vmatprep.subr.bf16.mxu0 %v2438
    %2986 = vmatpush1.bf16.msra.mxu0 %v2437
    %2987 = vmatprep.subr.bf16.mxu0 %v2440
    %2988 = vmatpush1.bf16.msra.mxu0 %v2439
    %2989 = vmatprep.subr.bf16.mxu0 %v2442
    %2990 = vmatpush1.bf16.msra.mxu0 %v2441
    %2991 = vmatprep.subr.bf16.mxu0 %v2444
    %2992 = vmatpush1.bf16.msra.mxu0 %v2443
    %2993 = vmatprep.subr.bf16.mxu0 %v2446
    %2994 = vmatpush1.bf16.msra.mxu0 %v2445
    %2995 = vmatprep.subr.bf16.mxu0 %v2448
    %2996 = vmatpush1.bf16.msra.mxu0 %v2447
    %2997 = vmatprep.subr.bf16.mxu0 %v2450
    %2998 = vmatpush1.bf16.msra.mxu0 %v2449
    %2999 = vmatprep.subr.bf16.mxu0 %v2452
    %3000 = vmatpush1.bf16.msra.mxu0 %v2451
    %3001 = vmatprep.subr.bf16.mxu0 %v2454
    %3002 = vmatpush1.bf16.msra.mxu0 %v2453
    %3003 = vmatprep.mubr.bf16.mxu0 %v1252
    %3004 = vmatmul.mubr.bf16.gmra.mrb[0].mxu0 %v1251
    %v3005 = vpop.f32.mrb[0].mxu0
    %v3006 = vadd.f32 %v2965, %v3005
    %v3007 = vpop.f32.mrb[0].mxu0
    %v3008 = vadd.f32 %v2967, %v3007
    %v3009 = vpop.f32.mrb[0].mxu0
    %v3010 = vpop.f32.mrb[0].mxu0
    %3011 = vdwg.mxu0
    %3012 = vmatprep.subr.bf16.mxu0 %v2456
    %3013 = vmatpush1.bf16.msra.mxu0 %v2455
    %3014 = vmatprep.subr.bf16.mxu0 %v2458
    %3015 = vmatpush1.bf16.msra.mxu0 %v2457
    %3016 = vmatprep.subr.bf16.mxu0 %v2460
    %3017 = vmatpush1.bf16.msra.mxu0 %v2459
    %3018 = vmatprep.subr.bf16.mxu0 %v2462
    %3019 = vmatpush1.bf16.msra.mxu0 %v2461
    %3020 = vmatprep.subr.bf16.mxu0 %v2464
    %3021 = vmatpush1.bf16.msra.mxu0 %v2463
    %3022 = vmatprep.subr.bf16.mxu0 %v2466
    %3023 = vmatpush1.bf16.msra.mxu0 %v2465
    %3024 = vmatprep.subr.bf16.mxu0 %v2468
    %3025 = vmatpush1.bf16.msra.mxu0 %v2467
    %3026 = vmatprep.subr.bf16.mxu0 %v2470
    %3027 = vmatpush1.bf16.msra.mxu0 %v2469
    %3028 = vmatprep.subr.bf16.mxu0 %v2472
    %3029 = vmatpush1.bf16.msra.mxu0 %v2471
    %3030 = vmatprep.subr.bf16.mxu0 %v2474
    %3031 = vmatpush1.bf16.msra.mxu0 %v2473
    %3032 = vmatprep.subr.bf16.mxu0 %v2476
    %3033 = vmatpush1.bf16.msra.mxu0 %v2475
    %3034 = vmatprep.subr.bf16.mxu0 %v2478
    %3035 = vmatpush1.bf16.msra.mxu0 %v2477
    %3036 = vmatprep.subr.bf16.mxu0 %v2480
    %3037 = vmatpush1.bf16.msra.mxu0 %v2479
    %3038 = vmatprep.subr.bf16.mxu0 %v2482
    %3039 = vmatpush1.bf16.msra.mxu0 %v2481
    %3040 = vmatprep.subr.bf16.mxu0 %v2484
    %3041 = vmatpush1.bf16.msra.mxu0 %v2483
    %3042 = vmatprep.subr.bf16.mxu0 %v2486
    %3043 = vmatpush1.bf16.msra.mxu0 %v2485
    %3044 = vmatprep.mubr.bf16.mxu0 %v1254
    %3045 = vmatmul.mubr.bf16.gmra.mrb[0].mxu0 %v1253
    %v3046 = vpop.f32.mrb[0].mxu0
    %v3047 = vadd.f32 %v3006, %v3046
    %v3048 = vpop.f32.mrb[0].mxu0
    %v3049 = vadd.f32 %v3008, %v3048
    %v3050 = vpop.f32.mrb[0].mxu0
    %v3051 = vpop.f32.mrb[0].mxu0
    %3052 = vdwg.mxu0
    %3053 = vmatprep.subr.bf16.mxu0 %v2488
    %3054 = vmatpush1.bf16.msra.mxu0 %v2487
    %3055 = vmatprep.subr.bf16.mxu0 %v2490
    %3056 = vmatpush1.bf16.msra.mxu0 %v2489
    %3057 = vmatprep.subr.bf16.mxu0 %v2492
    %3058 = vmatpush1.bf16.msra.mxu0 %v2491
    %3059 = vmatprep.subr.bf16.mxu0 %v2494
    %3060 = vmatpush1.bf16.msra.mxu0 %v2493
    %3061 = vmatprep.subr.bf16.mxu0 %v2496
    %3062 = vmatpush1.bf16.msra.mxu0 %v2495
    %3063 = vmatprep.subr.bf16.mxu0 %v2498
    %3064 = vmatpush1.bf16.msra.mxu0 %v2497
    %3065 = vmatprep.subr.bf16.mxu0 %v2500
    %3066 = vmatpush1.bf16.msra.mxu0 %v2499
    %3067 = vmatprep.subr.bf16.mxu0 %v2502
    %3068 = vmatpush1.bf16.msra.mxu0 %v2501
    %3069 = vmatprep.subr.bf16.mxu0 %v2504
    %3070 = vmatpush1.bf16.msra.mxu0 %v2503
    %3071 = vmatprep.subr.bf16.mxu0 %v2506
    %3072 = vmatpush1.bf16.msra.mxu0 %v2505
    %3073 = vmatprep.subr.bf16.mxu0 %v2508
    %3074 = vmatpush1.bf16.msra.mxu0 %v2507
    %3075 = vmatprep.subr.bf16.mxu0 %v2510
    %3076 = vmatpush1.bf16.msra.mxu0 %v2509
    %3077 = vmatprep.subr.bf16.mxu0 %v2512
    %3078 = vmatpush1.bf16.msra.mxu0 %v2511
    %3079 = vmatprep.subr.bf16.mxu0 %v2514
    %3080 = vmatpush1.bf16.msra.mxu0 %v2513
    %3081 = vmatprep.subr.bf16.mxu0 %v2516
    %3082 = vmatpush1.bf16.msra.mxu0 %v2515
    %3083 = vmatprep.subr.bf16.mxu0 %v2518
    %3084 = vmatpush1.bf16.msra.mxu0 %v2517
    %3085 = vmatprep.mubr.bf16.mxu0 %v1256
    %3086 = vmatmul.mubr.bf16.gmra.mrb[0].mxu0 %v1255
    %v3087 = vpop.f32.mrb[0].mxu0
    %v3088 = vadd.f32 %v3047, %v3087
    %v3089 = vpop.f32.mrb[0].mxu0
    %v3090 = vadd.f32 %v3049, %v3089
    %v3091 = vpop.f32.mrb[0].mxu0
    %v3092 = vpop.f32.mrb[0].mxu0
    %3093 = vdwg.mxu0
    %3094 = vmatprep.subr.bf16.mxu0 %v2520
    %3095 = vmatpush1.bf16.msra.mxu0 %v2519
    %3096 = vmatprep.subr.bf16.mxu0 %v2522
    %3097 = vmatpush1.bf16.msra.mxu0 %v2521
    %3098 = vmatprep.subr.bf16.mxu0 %v2524
    %3099 = vmatpush1.bf16.msra.mxu0 %v2523
    %3100 = vmatprep.subr.bf16.mxu0 %v2526
    %3101 = vmatpush1.bf16.msra.mxu0 %v2525
    %3102 = vmatprep.subr.bf16.mxu0 %v2528
    %3103 = vmatpush1.bf16.msra.mxu0 %v2527
    %3104 = vmatprep.subr.bf16.mxu0 %v2530
    %3105 = vmatpush1.bf16.msra.mxu0 %v2529
    %3106 = vmatprep.subr.bf16.mxu0 %v2532
    %3107 = vmatpush1.bf16.msra.mxu0 %v2531
    %3108 = vmatprep.subr.bf16.mxu0 %v2534
    %3109 = vmatpush1.bf16.msra.mxu0 %v2533
    %3110 = vmatprep.subr.bf16.mxu0 %v2536
    %3111 = vmatpush1.bf16.msra.mxu0 %v2535
    %3112 = vmatprep.subr.bf16.mxu0 %v2538
    %3113 = vmatpush1.bf16.msra.mxu0 %v2537
    %3114 = vmatprep.subr.bf16.mxu0 %v2540
    %3115 = vmatpush1.bf16.msra.mxu0 %v2539
    %3116 = vmatprep.subr.bf16.mxu0 %v2542
    %3117 = vmatpush1.bf16.msra.mxu0 %v2541
    %3118 = vmatprep.subr.bf16.mxu0 %v2544
    %3119 = vmatpush1.bf16.msra.mxu0 %v2543
    %3120 = vmatprep.subr.bf16.mxu0 %v2546
    %3121 = vmatpush1.bf16.msra.mxu0 %v2545
    %3122 = vmatprep.subr.bf16.mxu0 %v2548
    %3123 = vmatpush1.bf16.msra.mxu0 %v2547
    %3124 = vmatprep.subr.bf16.mxu0 %v2550
    %3125 = vmatpush1.bf16.msra.mxu0 %v2549
    %3126 = vmatprep.mubr.bf16.mxu0 %v1258
    %3127 = vmatmul.mubr.bf16.gmra.mrb[0].mxu0 %v1257
    %v3128 = vpop.f32.mrb[0].mxu0
    %v3129 = vadd.f32 %v3088, %v3128
    %v3130 = vpop.f32.mrb[0].mxu0
    %v3131 = vadd.f32 %v3090, %v3130
    %v3132 = vpop.f32.mrb[0].mxu0
    %v3133 = vpop.f32.mrb[0].mxu0
    %3134 = vdwg.mxu0
    %v3135 = vpack.c.bf16 %v3129, %v3129
    %v3136 = vpack.c.bf16 %v3131, %v3131
    %v3137 = vld [vmem:[%s5] sm:$0xf]
    %v3138 = vld [vmem:[%s5 + $0x4] sm:$0xf]
    %v3139 = vld [vmem:[%s5 + $0x8] sm:$0xf]
    %v3140 = vld [vmem:[%s5 + $0xc] sm:$0xf]
    %v3141 = vld [vmem:[%s5 + $0x10] sm:$0xf]
    %v3142 = vld [vmem:[%s5 + $0x14] sm:$0xf]
    %v3143 = vld [vmem:[%s5 + $0x18] sm:$0xf]
    %v3144 = vld [vmem:[%s5 + $0x1c] sm:$0xf]
    %v3145 = vld [vmem:[%s5 + $0x20] sm:$0xf]
    %v3146 = vld [vmem:[%s5 + $0x24] sm:$0xf]
    %v3147 = vld [vmem:[%s5 + $0x28] sm:$0xf]
    %v3148 = vld [vmem:[%s5 + $0x2c] sm:$0xf]
    %v3149 = vld [vmem:[%s5 + $0x30] sm:$0xf]
    %v3150 = vld [vmem:[%s5 + $0x34] sm:$0xf]
    %v3151 = vld [vmem:[%s5 + $0x38] sm:$0xf]
    %v3152 = vld [vmem:[%s5 + $0x3c] sm:$0xf]
    %v3153 = vld [vmem:[%s5 + $0x40] sm:$0xf]
    %v3154 = vld [vmem:[%s5 + $0x44] sm:$0xf]
    %v3155 = vld [vmem:[%s5 + $0x48] sm:$0xf]
    %v3156 = vld [vmem:[%s5 + $0x4c] sm:$0xf]
    %v3157 = vld [vmem:[%s5 + $0x50] sm:$0xf]
    %v3158 = vld [vmem:[%s5 + $0x54] sm:$0xf]
    %v3159 = vld [vmem:[%s5 + $0x58] sm:$0xf]
    %v3160 = vld [vmem:[%s5 + $0x5c] sm:$0xf]
    %v3161 = vld [vmem:[%s5 + $0x60] sm:$0xf]
    %v3162 = vld [vmem:[%s5 + $0x64] sm:$0xf]
    %v3163 = vld [vmem:[%s5 + $0x68] sm:$0xf]
    %v3164 = vld [vmem:[%s5 + $0x6c] sm:$0xf]
    %v3165 = vld [vmem:[%s5 + $0x70] sm:$0xf]
    %v3166 = vld [vmem:[%s5 + $0x74] sm:$0xf]
    %v3167 = vld [vmem:[%s5 + $0x78] sm:$0xf]
    %v3168 = vld [vmem:[%s5 + $0x7c] sm:$0xf]
    %v3169 = vld [vmem:[%s6] sm:$0x1]
    %v3171 = vlaneseq
    %v3172 = vshrl.u32 %v3171, 7
    %v3173 = vsub.s32 0, %v3172
    %v3174 = vrot.slane %v3169, %v3173
    %v3208 = vunpack.c.l.b16 %v3137
    %v3209 = vunpack.c.l.b16 %v3138
    %v3210 = vunpack.c.l.b16 %v3139
    %v3211 = vunpack.c.l.b16 %v3140
    %v3212 = vunpack.c.l.b16 %v3141
    %v3213 = vunpack.c.l.b16 %v3142
    %v3214 = vunpack.c.l.b16 %v3143
    %v3215 = vunpack.c.l.b16 %v3144
    %v3216 = vunpack.c.l.b16 %v3145
    %v3217 = vunpack.c.l.b16 %v3146
    %v3218 = vunpack.c.l.b16 %v3147
    %v3219 = vunpack.c.l.b16 %v3148
    %v3220 = vunpack.c.l.b16 %v3149
    %v3221 = vunpack.c.l.b16 %v3150
    %v3222 = vunpack.c.l.b16 %v3151
    %v3223 = vunpack.c.l.b16 %v3152
    %v3224 = vunpack.c.l.b16 %v3153
    %v3225 = vunpack.c.l.b16 %v3154
    %v3226 = vunpack.c.l.b16 %v3155
    %v3227 = vunpack.c.l.b16 %v3156
    %v3228 = vunpack.c.l.b16 %v3157
    %v3229 = vunpack.c.l.b16 %v3158
    %v3230 = vunpack.c.l.b16 %v3159
    %v3231 = vunpack.c.l.b16 %v3160
    %v3232 = vunpack.c.l.b16 %v3161
    %v3233 = vunpack.c.l.b16 %v3162
    %v3234 = vunpack.c.l.b16 %v3163
    %v3235 = vunpack.c.l.b16 %v3164
    %v3236 = vunpack.c.l.b16 %v3165
    %v3237 = vunpack.c.l.b16 %v3166
    %v3238 = vunpack.c.l.b16 %v3167
    %v3239 = vunpack.c.l.b16 %v3168
    %v3240 = vpack.c.b16 %v3209, %v3208
    %v3241 = vpack.c.b16 %v3211, %v3210
    %v3242 = vpack.c.b16 %v3213, %v3212
    %v3243 = vpack.c.b16 %v3215, %v3214
    %v3244 = vpack.c.b16 %v3217, %v3216
    %v3245 = vpack.c.b16 %v3219, %v3218
    %v3246 = vpack.c.b16 %v3221, %v3220
    %v3247 = vpack.c.b16 %v3223, %v3222
    %v3248 = vpack.c.b16 %v3225, %v3224
    %v3249 = vpack.c.b16 %v3227, %v3226
    %v3250 = vpack.c.b16 %v3229, %v3228
    %v3251 = vpack.c.b16 %v3231, %v3230
    %v3252 = vpack.c.b16 %v3233, %v3232
    %v3253 = vpack.c.b16 %v3235, %v3234
    %v3254 = vpack.c.b16 %v3237, %v3236
    %v3255 = vpack.c.b16 %v3239, %v3238
    %3272 = vmatprep.subr.bf16.mxu0 0
    %3273 = vmatpush1.bf16.msra.mxu0 %v3240
    %3274 = vmatprep.subr.bf16.mxu0 0
    %3275 = vmatpush1.bf16.msra.mxu0 %v3241
    %3276 = vmatprep.subr.bf16.mxu0 0
    %3277 = vmatpush1.bf16.msra.mxu0 %v3242
    %3278 = vmatprep.subr.bf16.mxu0 0
    %3279 = vmatpush1.bf16.msra.mxu0 %v3243
    %3280 = vmatprep.subr.bf16.mxu0 0
    %3281 = vmatpush1.bf16.msra.mxu0 %v3244
    %3282 = vmatprep.subr.bf16.mxu0 0
    %3283 = vmatpush1.bf16.msra.mxu0 %v3245
    %3284 = vmatprep.subr.bf16.mxu0 0
    %3285 = vmatpush1.bf16.msra.mxu0 %v3246
    %3286 = vmatprep.subr.bf16.mxu0 0
    %3287 = vmatpush1.bf16.msra.mxu0 %v3247
    %3288 = vmatprep.subr.bf16.mxu0 0
    %3289 = vmatpush1.bf16.msra.mxu0 %v3248
    %3290 = vmatprep.subr.bf16.mxu0 0
    %3291 = vmatpush1.bf16.msra.mxu0 %v3249
    %3292 = vmatprep.subr.bf16.mxu0 0
    %3293 = vmatpush1.bf16.msra.mxu0 %v3250
    %3294 = vmatprep.subr.bf16.mxu0 0
    %3295 = vmatpush1.bf16.msra.mxu0 %v3251
    %3296 = vmatprep.subr.bf16.mxu0 0
    %3297 = vmatpush1.bf16.msra.mxu0 %v3252
    %3298 = vmatprep.subr.bf16.mxu0 0
    %3299 = vmatpush1.bf16.msra.mxu0 %v3253
    %3300 = vmatprep.subr.bf16.mxu0 0
    %3301 = vmatpush1.bf16.msra.mxu0 %v3254
    %3302 = vmatprep.subr.bf16.mxu0 0
    %3303 = vmatpush1.bf16.msra.mxu0 %v3255
    %3304 = vmatprep.mubr.bf16.mxu0 %v3136
    %3305 = vmatmul.mubr.bf16.gmra.mrb[0].mxu0 %v3135
    %v3306 = vpop.f32.mrb[0].mxu0
    %v3307 = vadd.f32 %v3174, %v3306
    %v3308 = vpop.f32.mrb[0].mxu0
    %v3309 = vpop.f32.mrb[0].mxu0
    %v3310 = vpop.f32.mrb[0].mxu0
    %3311 = vdwg.mxu0
    %v3312 = vpack.c.bf16 %v3307, %v3307
    %v3313 = vld [vmem:[%s7] sm:$0xf]
    %v3314 = vld [vmem:[%s7 + $0x4] sm:$0xf]
    %v3315 = vld [vmem:[%s7 + $0x8] sm:$0xf]
    %v3316 = vld [vmem:[%s7 + $0xc] sm:$0xf]
    %v3317 = vld [vmem:[%s7 + $0x10] sm:$0xf]
    %v3318 = vld [vmem:[%s7 + $0x14] sm:$0xf]
    %v3319 = vld [vmem:[%s7 + $0x18] sm:$0xf]
    %v3320 = vld [vmem:[%s7 + $0x1c] sm:$0xf]
    %v3321 = vld [vmem:[%s8] sm:$0x1]
    %v3323 = vlaneseq
    %v3324 = vshrl.u32 %v3323, 7
    %v3325 = vsub.s32 0, %v3324
    %v3326 = vrot.slane %v3321, %v3325
    %v3336 = vunpack.c.l.b16 %v3313
    %v3337 = vunpack.c.l.b16 %v3314
    %v3338 = vunpack.c.l.b16 %v3315
    %v3339 = vunpack.c.l.b16 %v3316
    %v3340 = vunpack.c.l.b16 %v3317
    %v3341 = vunpack.c.l.b16 %v3318
    %v3342 = vunpack.c.l.b16 %v3319
    %v3343 = vunpack.c.l.b16 %v3320
    %v3344 = vpack.c.b16 %v3337, %v3336
    %v3345 = vpack.c.b16 %v3339, %v3338
    %v3346 = vpack.c.b16 %v3341, %v3340
    %v3347 = vpack.c.b16 %v3343, %v3342
    %vm3352 = vcmask 523264
    %v3354 = vsel %vm3352, %v3312, 0
    %3356 = vmatprep.subr.bf16.mxu0 0
    %3357 = vmatpush1.bf16.msra.mxu0 %v3344
    %3358 = vmatprep.subr.bf16.mxu0 0
    %3359 = vmatpush1.bf16.msra.mxu0 %v3345
    %3360 = vmatprep.subr.bf16.mxu0 0
    %3361 = vmatpush1.bf16.msra.mxu0 %v3346
    %3362 = vmatprep.subr.bf16.mxu0 0
    %3363 = vmatpush1.bf16.msra.mxu0 %v3347
    %3364 = vmatprep.subr.bf16.mxu0 0
    %3365 = vmatpush1.bf16.msra.mxu0 0
    %3366 = vmatprep.subr.bf16.mxu0 0
    %3367 = vmatpush1.bf16.msra.mxu0 0
    %3368 = vmatprep.subr.bf16.mxu0 0
    %3369 = vmatpush1.bf16.msra.mxu0 0
    %3370 = vmatprep.subr.bf16.mxu0 0
    %3371 = vmatpush1.bf16.msra.mxu0 0
    %3372 = vmatprep.subr.bf16.mxu0 0
    %3373 = vmatpush1.bf16.msra.mxu0 0
    %3374 = vmatprep.subr.bf16.mxu0 0
    %3375 = vmatpush1.bf16.msra.mxu0 0
    %3376 = vmatprep.subr.bf16.mxu0 0
    %3377 = vmatpush1.bf16.msra.mxu0 0
    %3378 = vmatprep.subr.bf16.mxu0 0
    %3379 = vmatpush1.bf16.msra.mxu0 0
    %3380 = vmatprep.subr.bf16.mxu0 0
    %3381 = vmatpush1.bf16.msra.mxu0 0
    %3382 = vmatprep.subr.bf16.mxu0 0
    %3383 = vmatpush1.bf16.msra.mxu0 0
    %3384 = vmatprep.subr.bf16.mxu0 0
    %3385 = vmatpush1.bf16.msra.mxu0 0
    %3386 = vmatprep.subr.bf16.mxu0 0
    %3387 = vmatpush1.bf16.msra.mxu0 0
    %3388 = vmatprep.mubr.bf16.mxu0 0
    %3389 = vmatmul.mubr.bf16.gmra.mrb[0].mxu0 %v3354
    %v3390 = vpop.f32.mrb[0].mxu0
    %v3391 = vadd.f32 %v3326, %v3390
    %v3392 = vpop.f32.mrb[0].mxu0
    %v3393 = vpop.f32.mrb[0].mxu0
    %v3394 = vpop.f32.mrb[0].mxu0
    %3395 = vdwg.mxu0
    %3396 = vst [vmem:[#allocation7] sm:$0xff] %v3391
    // Predicated region
    $region46: #{tpu_custom_call.1} parent=1 // pred_check
      _
    $region47: #{tpu_custom_call.1} parent=1 // pred_check_branch
      %3398 = sbr.rel (0) target = $region49
    $region48: #{tpu_custom_call.1} parent=1 // pred_region
      %s3400 = ssub.s32 128, 128
      %3401 = vsyncadd [#allocation4], %s3400
      %s3403 = sshll.u32 [#allocation7], 4
      %s3404 = int_to_ptr.vmem [resolvable:$true] %s3403
      %3406 = dma.vmem_to_hbm [thread:$0]  %s3404, 128, %s9, [#allocation4]
    $region49: #{tpu_custom_call.1} parent=1 // pred_fallthru
      _
    // Predicated region
    $region50: #{tpu_custom_call.1} parent=1 // pred_check
      _
    $region51: #{tpu_custom_call.1} parent=1 // pred_check_branch
      %3408 = sbr.rel (0) target = $region53
    $region52: #{tpu_custom_call.1} parent=1 // pred_region
      %3409 = dma.done [#allocation4], 128
    $region53: #{tpu_custom_call.1} parent=1 // pred_fallthru
      _
    %3410 = vsyncpa [#allocation3], 1
    %3411 = vsyncpa [#allocation6], 1
    %3412 = vsyncpa [#allocation4], 1

</llo_original>
